<compile_context>
chip_gen: v5e
topology: v5e:2x2
jax: 0.10.0
libtpu: 0.0.40
codegen_flags: <defaults>
</compile_context>

<pallas_src>
import functools
import math

import jax
import jax.numpy as jnp
from jax.experimental import pallas as pl
from jax.experimental.pallas import tpu as pltpu


# ----------------------------------------------------------------------------
# Fused kernel: packed one-hot -> single conv matmul -> masked max-pool + ReLU
#               -> split-w1 MLP head -> log_softmax
# ----------------------------------------------------------------------------
def _cnn_cdist_kernel(tok_ref, wc_ref, bc_ref, w1a_ref, w1b_ref, b1_ref,
                      w2_ref, b2_ref, out_ref, *, batch, window_size,
                      vocab_size, kernel_sizes, out_channels):
    B = batch
    W = window_size
    V = vocab_size
    S = 2 * W                      # both sides of one example, flattened in time
    R = B * S                      # total rows in the flattened token sequence
    max_k = max(kernel_sizes)
    sum_c = sum(out_channels)

    # ---- packed one-hot activation (R, max_k*V) -------------------------------
    # Column block i holds onehot(tok[r + i]); the shift is applied to the tiny
    # (R, 1) int32 token column, and wrapped rows only feed window positions that
    # the pooling mask below discards.
    tok = tok_ref[...]                                             # (R, 1) int32
    vocab_iota = jax.lax.broadcasted_iota(jnp.int32, (R, V), 1)
    taps = []
    for i in range(max_k):
        if i == 0:
            tok_i = tok
        else:
            tok_i = jnp.concatenate([tok[i:, :], tok[:i, :]], axis=0)
        taps.append(jnp.where(tok_i == vocab_iota, 1.0, 0.0))      # (R, V) f32
    packed = jnp.concatenate(taps, axis=1).astype(wc_ref.dtype)    # (R, max_k*V)

    # ---- embedding + all conv branches in ONE MXU matmul ----------------------
    conv = jnp.dot(packed, wc_ref[...],
                   preferred_element_type=jnp.float32) + bc_ref[...]   # (R, sum_C)

    # ---- masked max-pool over time + ReLU (masks/iotas built once) ------------
    conv3 = conv.reshape(B, S, sum_c)
    t_idx = jax.lax.broadcasted_iota(jnp.int32, (B, S, sum_c), 1)
    c_idx = jax.lax.broadcasted_iota(jnp.int32, (B, S, sum_c), 2)

    # per-channel valid window length L = W - k + 1 (channel groups are static)
    cums = []
    acc = 0
    for c in out_channels:
        acc += c
        cums.append(acc)
    Ls = [W - k + 1 for k in kernel_sizes]
    L_of_c = jnp.full((B, S, sum_c), Ls[-1], dtype=jnp.int32)
    for g in range(len(kernel_sizes) - 2, -1, -1):
        L_of_c = jnp.where(c_idx < cums[g], Ls[g], L_of_c)

    # side 1 = x[:, W:]  (rows t in [W, W+L));  side 2 = x[:, :W]  (t in [0, L))
    valid1 = (t_idx >= W) & (t_idx < (W + L_of_c))
    valid2 = t_idx < L_of_c
    f1 = jnp.maximum(jnp.max(jnp.where(valid1, conv3, -jnp.inf), axis=1), 0.0)
    f2 = jnp.maximum(jnp.max(jnp.where(valid2, conv3, -jnp.inf), axis=1), 0.0)

    # ---- MLP head: relu(f1 @ w1a + f2 @ w1b + b1) -> linear2 -> log_softmax ---
    h = (jnp.dot(f1.astype(w1a_ref.dtype), w1a_ref[...],
                 preferred_element_type=jnp.float32)
         + jnp.dot(f2.astype(w1b_ref.dtype), w1b_ref[...],
                   preferred_element_type=jnp.float32)
         + b1_ref[...])
    h = jnp.maximum(h, 0.0)
    z = jnp.dot(h, w2_ref[...], preferred_element_type=jnp.float32) + b2_ref[...]
    z_max = jnp.max(z, axis=1, keepdims=True)
    zs = z - z_max
    lse = jnp.log(jnp.sum(jnp.exp(zs), axis=1, keepdims=True))
    out_ref[...] = zs - lse


# ----------------------------------------------------------------------------
# One-time parameter preparation (all reshapes / folds hoisted out of the fwd)
# ----------------------------------------------------------------------------
def prepare_params(emb_table, conv_weights, conv_biases, w1, b1, w2, b2,
                   kernel_sizes, *, compute_dtype=jnp.bfloat16):
    hp = jax.lax.Precision.HIGHEST
    V, _ = emb_table.shape
    max_k = max(kernel_sizes)
    out_channels = tuple(int(w.shape[0]) for w in conv_weights)
    sum_c = sum(out_channels)

    # Fold the embedding into every conv tap and pack taps + branches into one
    # (max_k*V, sum_C) weight:  wc[i*V + v, c] = sum_d emb[v, d] * conv_w[c,0,i,d]
    # (taps i >= k are zero; those window positions are masked by the pooling).
    blocks = []
    for i in range(max_k):
        row = []
        for w, k in zip(conv_weights, kernel_sizes):
            c = w.shape[0]
            if i < k:
                tap = jnp.transpose(w[:, 0, i, :], (1, 0))             # (D, C)
                row.append(jnp.dot(emb_table, tap, precision=hp))      # (V, C)
            else:
                row.append(jnp.zeros((V, c), jnp.float32))
        blocks.append(jnp.concatenate(row, axis=1))                    # (V, sum_C)
    wc = jnp.concatenate(blocks, axis=0).astype(compute_dtype)         # (max_k*V, sum_C)
    bc = jnp.concatenate([jnp.reshape(b, (-1,)) for b in conv_biases]
                         ).reshape(1, sum_c).astype(jnp.float32)

    w1 = jnp.asarray(w1)
    return {
        "wc": wc,
        "bc": bc,
        "w1a": w1[:sum_c, :].astype(compute_dtype),   # rows acting on side 1 (x[:, W:])
        "w1b": w1[sum_c:, :].astype(compute_dtype),   # rows acting on side 2 (x[:, :W])
        "b1": jnp.reshape(jnp.asarray(b1), (1, -1)).astype(jnp.float32),
        "w2": jnp.asarray(w2).astype(jnp.float32),
        "b2": jnp.reshape(jnp.asarray(b2), (1, -1)).astype(jnp.float32),
    }


# ----------------------------------------------------------------------------
# Forward: one pallas_call, everything VMEM-resident (params < 0.6 MiB).
# ----------------------------------------------------------------------------
@functools.partial(jax.jit,
                   static_argnames=("window_size", "vocab_size", "kernel_sizes",
                                    "out_channels", "n_classes"))
def cnn_cdist_forward(tokens, params, *, window_size, vocab_size, kernel_sizes,
                      out_channels, n_classes):
    batch = tokens.shape[0]
    tok2d = tokens.reshape(batch * 2 * window_size, 1).astype(jnp.int32)

    args = [tok2d, params["wc"], params["bc"], params["w1a"], params["w1b"],
            params["b1"], params["w2"], params["b2"]]

    vmem = pl.BlockSpec(memory_space=pltpu.MemorySpace.VMEM)
    kernel = functools.partial(_cnn_cdist_kernel, batch=batch,
                               window_size=window_size, vocab_size=vocab_size,
                               kernel_sizes=kernel_sizes,
                               out_channels=out_channels)
    return pl.pallas_call(
        kernel,
        out_shape=jax.ShapeDtypeStruct((batch, n_classes), jnp.float32),
        in_specs=[vmem] * len(args),
        out_specs=vmem,
    )(*args)


# ----------------------------------------------------------------------------
# Pure-JAX f32 reference (mirrors the PyTorch module) for a correctness check.
# ----------------------------------------------------------------------------
def reference_forward(tokens, emb, conv_weights, conv_biases, w1, b1, w2, b2,
                      window_size, kernel_sizes):
    hp = jax.lax.Precision.HIGHEST

    def side(tok_side):
        bsz = tok_side.shape[0]
        embeds = jnp.take(emb, tok_side, axis=0)                    # (B, W, D)
        d = embeds.shape[2]
        feats = []
        for w, b, k in zip(conv_weights, conv_biases, kernel_sizes):
            c = w.shape[0]
            L = window_size - k + 1
            win = jnp.stack([embeds[:, i:i + L, :] for i in range(k)], axis=2)
            win = win.reshape(bsz * L, k * d)
            wf = w.reshape(c, k * d).T
            conv = (jnp.dot(win, wf, precision=hp) + b[None, :]).reshape(bsz, L, c)
            feats.append(jnp.maximum(jnp.max(conv, axis=1), 0.0))
        return jnp.concatenate(feats, axis=1)

    W = window_size
    out1 = side(tokens[:, W:])
    out2 = side(tokens[:, :W])
    feat = jnp.concatenate([out1, out2], axis=1)
    h = jnp.maximum(jnp.dot(feat, w1, precision=hp) + b1, 0.0)
    z = jnp.dot(h, w2, precision=hp) + b2
    return jax.nn.log_softmax(z, axis=1)


# ----------------------------------------------------------------------------
if __name__ == "__main__":
    window_size = 16
    vocab_size = 32
    embedding_dim = 32
    out_channels = (128, 128, 128)
    kernel_sizes = (3, 4, 5)
    n_classes = 10
    linear_size = 256
    batch = 2

    key = jax.random.PRNGKey(0)
    keys = jax.random.split(key, 12)

    emb_table = 0.1 * jax.random.normal(keys[0], (vocab_size, embedding_dim),
                                        jnp.float32)

    conv_weights, conv_biases = [], []
    for i, (k, c) in enumerate(zip(kernel_sizes, out_channels)):
        fan_in = k * embedding_dim
        conv_weights.append(
            jax.random.normal(keys[1 + i], (c, 1, k, embedding_dim), jnp.float32)
            / math.sqrt(fan_in))
        conv_biases.append(0.01 * jax.random.normal(keys[4 + i], (c,), jnp.float32))

    sum_c = sum(out_channels)
    linear_input_dim = 2 * sum_c
    w1 = jax.random.normal(keys[7], (linear_input_dim, linear_size), jnp.float32) \
        / math.sqrt(linear_input_dim)
    b1 = 0.01 * jax.random.normal(keys[8], (1, linear_size), jnp.float32)
    w2 = jax.random.normal(keys[9], (linear_size, n_classes), jnp.float32) \
        / math.sqrt(linear_size)
    b2 = 0.01 * jax.random.normal(keys[10], (1, n_classes), jnp.float32)

    x = jax.random.randint(keys[11], (batch, 2 * window_size), 0, vocab_size,
                           dtype=jnp.int32)

    params = prepare_params(emb_table, conv_weights, conv_biases, w1, b1, w2, b2,
                            kernel_sizes)

    out = cnn_cdist_forward(x, params, window_size=window_size,
                            vocab_size=vocab_size, kernel_sizes=kernel_sizes,
                            out_channels=out_channels, n_classes=n_classes)
    out = jax.block_until_ready(out)

    assert out.shape == (batch, n_classes)
    assert out.dtype == jnp.float32
    # log_softmax rows should sum (in prob space) to ~1
    assert bool(jnp.all(jnp.abs(jnp.sum(jnp.exp(out), axis=1) - 1.0) < 1e-4))

    # Compare against the f32 module-faithful reference; tolerance covers the
    # bf16 weight storage (weights rounded to bf16, all accumulation in f32).
    ref = reference_forward(x, emb_table, conv_weights, conv_biases, w1, b1, w2,
                            b2, window_size, kernel_sizes)
    assert bool(jnp.allclose(out, ref, atol=2e-2, rtol=1e-2)), (out, ref)

    print("KERNEL_OK")
</pallas_src>

<mosaic_0001>
module attributes {stable_mosaic.version = 11 : i64} {
  func.func @_cnn_cdist_kernel(%arg0: memref<64x1xi32, #tpu.memory_space<vmem>>, %arg1: memref<160x384xbf16, #tpu.memory_space<vmem>>, %arg2: memref<1x384xf32, #tpu.memory_space<vmem>>, %arg3: memref<384x256xbf16, #tpu.memory_space<vmem>>, %arg4: memref<384x256xbf16, #tpu.memory_space<vmem>>, %arg5: memref<1x256xf32, #tpu.memory_space<vmem>>, %arg6: memref<256x10xf32, #tpu.memory_space<vmem>>, %arg7: memref<1x10xf32, #tpu.memory_space<vmem>>, %arg8: memref<2x10xf32, #tpu.memory_space<vmem>>) attributes {dimension_semantics = [], scalar_prefetch = 0 : i64, scratch_operands = 0 : i64, tpu.core_type = #tpu.core_type<tc>} {
    %c0 = arith.constant 0 : index
    %c0_0 = arith.constant 0 : index
    %0 = vector.load %arg0[%c0, %c0_0] : memref<64x1xi32, #tpu.memory_space<vmem>>, vector<64x1xi32>
    %1 = tpu.iota {dimensions = array<i32: 1>} : vector<64x32xi32>
    %2 = vector.broadcast %0 : vector<64x1xi32> to vector<64x32xi32>
    %3 = arith.cmpi eq, %2, %1 : vector<64x32xi32>
    %cst = arith.constant 1.000000e+00 : f32
    %cst_1 = arith.constant 0.000000e+00 : f32
    %4 = vector.broadcast %cst : f32 to vector<64x32xf32>
    %5 = vector.broadcast %cst_1 : f32 to vector<64x32xf32>
    %6 = arith.select %3, %4, %5 : vector<64x32xi1>, vector<64x32xf32>
    %7 = vector.extract_strided_slice %0 {offsets = [1, 0], sizes = [63, 1], strides = [1, 1]} : vector<64x1xi32> to vector<63x1xi32>
    %8 = vector.extract_strided_slice %0 {offsets = [0, 0], sizes = [1, 1], strides = [1, 1]} : vector<64x1xi32> to vector<1x1xi32>
    %9 = tpu.concatenate %7, %8 in 0 : vector<63x1xi32>, vector<1x1xi32> -> vector<64x1xi32>
    %10 = vector.broadcast %9 : vector<64x1xi32> to vector<64x32xi32>
    %11 = arith.cmpi eq, %10, %1 : vector<64x32xi32>
    %cst_2 = arith.constant 1.000000e+00 : f32
    %cst_3 = arith.constant 0.000000e+00 : f32
    %12 = vector.broadcast %cst_2 : f32 to vector<64x32xf32>
    %13 = vector.broadcast %cst_3 : f32 to vector<64x32xf32>
    %14 = arith.select %11, %12, %13 : vector<64x32xi1>, vector<64x32xf32>
    %15 = vector.extract_strided_slice %0 {offsets = [2, 0], sizes = [62, 1], strides = [1, 1]} : vector<64x1xi32> to vector<62x1xi32>
    %16 = vector.extract_strided_slice %0 {offsets = [0, 0], sizes = [2, 1], strides = [1, 1]} : vector<64x1xi32> to vector<2x1xi32>
    %17 = tpu.concatenate %15, %16 in 0 : vector<62x1xi32>, vector<2x1xi32> -> vector<64x1xi32>
    %18 = vector.broadcast %17 : vector<64x1xi32> to vector<64x32xi32>
    %19 = arith.cmpi eq, %18, %1 : vector<64x32xi32>
    %cst_4 = arith.constant 1.000000e+00 : f32
    %cst_5 = arith.constant 0.000000e+00 : f32
    %20 = vector.broadcast %cst_4 : f32 to vector<64x32xf32>
    %21 = vector.broadcast %cst_5 : f32 to vector<64x32xf32>
    %22 = arith.select %19, %20, %21 : vector<64x32xi1>, vector<64x32xf32>
    %23 = vector.extract_strided_slice %0 {offsets = [3, 0], sizes = [61, 1], strides = [1, 1]} : vector<64x1xi32> to vector<61x1xi32>
    %24 = vector.extract_strided_slice %0 {offsets = [0, 0], sizes = [3, 1], strides = [1, 1]} : vector<64x1xi32> to vector<3x1xi32>
    %25 = tpu.concatenate %23, %24 in 0 : vector<61x1xi32>, vector<3x1xi32> -> vector<64x1xi32>
    %26 = vector.broadcast %25 : vector<64x1xi32> to vector<64x32xi32>
    %27 = arith.cmpi eq, %26, %1 : vector<64x32xi32>
    %cst_6 = arith.constant 1.000000e+00 : f32
    %cst_7 = arith.constant 0.000000e+00 : f32
    %28 = vector.broadcast %cst_6 : f32 to vector<64x32xf32>
    %29 = vector.broadcast %cst_7 : f32 to vector<64x32xf32>
    %30 = arith.select %27, %28, %29 : vector<64x32xi1>, vector<64x32xf32>
    %31 = vector.extract_strided_slice %0 {offsets = [4, 0], sizes = [60, 1], strides = [1, 1]} : vector<64x1xi32> to vector<60x1xi32>
    %32 = vector.extract_strided_slice %0 {offsets = [0, 0], sizes = [4, 1], strides = [1, 1]} : vector<64x1xi32> to vector<4x1xi32>
    %33 = tpu.concatenate %31, %32 in 0 : vector<60x1xi32>, vector<4x1xi32> -> vector<64x1xi32>
    %34 = vector.broadcast %33 : vector<64x1xi32> to vector<64x32xi32>
    %35 = arith.cmpi eq, %34, %1 : vector<64x32xi32>
    %cst_8 = arith.constant 1.000000e+00 : f32
    %cst_9 = arith.constant 0.000000e+00 : f32
    %36 = vector.broadcast %cst_8 : f32 to vector<64x32xf32>
    %37 = vector.broadcast %cst_9 : f32 to vector<64x32xf32>
    %38 = arith.select %35, %36, %37 : vector<64x32xi1>, vector<64x32xf32>
    %39 = tpu.concatenate %6, %14, %22, %30, %38 in 1 : vector<64x32xf32>, vector<64x32xf32>, vector<64x32xf32>, vector<64x32xf32>, vector<64x32xf32> -> vector<64x160xf32>
    %40 = arith.truncf %39 : vector<64x160xf32> to vector<64x160xbf16>
    %c0_10 = arith.constant 0 : index
    %c0_11 = arith.constant 0 : index
    %41 = vector.load %arg1[%c0_10, %c0_11] : memref<160x384xbf16, #tpu.memory_space<vmem>>, vector<160x384xbf16>
    %cst_12 = arith.constant dense<0.000000e+00> : vector<64x384xf32>
    %42 = tpu.matmul %40, %41, %cst_12 {dimension_numbers = #tpu.dot_dimension_numbers<[1], [0], [0], [1], [0, 0, 1, 1], [], []>} : vector<64x160xbf16>, vector<160x384xbf16>, vector<64x384xf32> -> vector<64x384xf32>
    %c0_13 = arith.constant 0 : index
    %c0_14 = arith.constant 0 : index
    %43 = vector.load %arg2[%c0_13, %c0_14] : memref<1x384xf32, #tpu.memory_space<vmem>>, vector<1x384xf32>
    %44 = vector.broadcast %43 : vector<1x384xf32> to vector<64x384xf32>
    %45 = arith.addf %42, %44 : vector<64x384xf32>
    %46 = vector.shape_cast %45 : vector<64x384xf32> to vector<2x32x384xf32>
    %47 = tpu.iota {dimensions = array<i32: 1>} : vector<2x32x384xi32>
    %48 = tpu.iota {dimensions = array<i32: 2>} : vector<2x32x384xi32>
    %c12_i32 = arith.constant 12 : i32
    %49 = vector.broadcast %c12_i32 : i32 to vector<2x32x384xi32>
    %c256_i32 = arith.constant 256 : i32
    %50 = vector.broadcast %c256_i32 : i32 to vector<2x32x384xi32>
    %51 = arith.cmpi slt, %48, %50 : vector<2x32x384xi32>
    %c13_i32 = arith.constant 13 : i32
    %52 = vector.broadcast %c13_i32 : i32 to vector<2x32x384xi32>
    %53 = arith.select %51, %52, %49 : vector<2x32x384xi1>, vector<2x32x384xi32>
    %c128_i32 = arith.constant 128 : i32
    %54 = vector.broadcast %c128_i32 : i32 to vector<2x32x384xi32>
    %55 = arith.cmpi slt, %48, %54 : vector<2x32x384xi32>
    %c14_i32 = arith.constant 14 : i32
    %56 = vector.broadcast %c14_i32 : i32 to vector<2x32x384xi32>
    %57 = arith.select %55, %56, %53 : vector<2x32x384xi1>, vector<2x32x384xi32>
    %c16_i32 = arith.constant 16 : i32
    %58 = vector.broadcast %c16_i32 : i32 to vector<2x32x384xi32>
    %59 = arith.cmpi sge, %47, %58 : vector<2x32x384xi32>
    %c16_i32_15 = arith.constant 16 : i32
    %60 = vector.broadcast %c16_i32_15 : i32 to vector<2x32x384xi32>
    %61 = arith.addi %60, %57 : vector<2x32x384xi32>
    %62 = arith.cmpi slt, %47, %61 : vector<2x32x384xi32>
    %63 = arith.andi %59, %62 : vector<2x32x384xi1>
    %64 = arith.cmpi slt, %47, %57 : vector<2x32x384xi32>
    %cst_16 = arith.constant 0xFF800000 : f32
    %65 = vector.broadcast %cst_16 : f32 to vector<2x32x384xf32>
    %66 = arith.select %63, %46, %65 : vector<2x32x384xi1>, vector<2x32x384xf32>
    %cst_17 = arith.constant dense<0xFF800000> : vector<2x384xf32>
    %67 = vector.multi_reduction <maximumf>, %66, %cst_17 [1] : vector<2x32x384xf32> to vector<2x384xf32>
    %cst_18 = arith.constant 0.000000e+00 : f32
    %68 = vector.broadcast %cst_18 : f32 to vector<2x384xf32>
    %69 = arith.maximumf %67, %68 : vector<2x384xf32>
    %cst_19 = arith.constant 0xFF800000 : f32
    %70 = vector.broadcast %cst_19 : f32 to vector<2x32x384xf32>
    %71 = arith.select %64, %46, %70 : vector<2x32x384xi1>, vector<2x32x384xf32>
    %cst_20 = arith.constant dense<0xFF800000> : vector<2x384xf32>
    %72 = vector.multi_reduction <maximumf>, %71, %cst_20 [1] : vector<2x32x384xf32> to vector<2x384xf32>
    %cst_21 = arith.constant 0.000000e+00 : f32
    %73 = vector.broadcast %cst_21 : f32 to vector<2x384xf32>
    %74 = arith.maximumf %72, %73 : vector<2x384xf32>
    %75 = arith.truncf %69 : vector<2x384xf32> to vector<2x384xbf16>
    %c0_22 = arith.constant 0 : index
    %c0_23 = arith.constant 0 : index
    %76 = vector.load %arg3[%c0_22, %c0_23] : memref<384x256xbf16, #tpu.memory_space<vmem>>, vector<384x256xbf16>
    %cst_24 = arith.constant dense<0.000000e+00> : vector<2x256xf32>
    %77 = tpu.matmul %75, %76, %cst_24 {dimension_numbers = #tpu.dot_dimension_numbers<[1], [0], [0], [1], [0, 0, 1, 1], [], []>} : vector<2x384xbf16>, vector<384x256xbf16>, vector<2x256xf32> -> vector<2x256xf32>
    %78 = arith.truncf %74 : vector<2x384xf32> to vector<2x384xbf16>
    %c0_25 = arith.constant 0 : index
    %c0_26 = arith.constant 0 : index
    %79 = vector.load %arg4[%c0_25, %c0_26] : memref<384x256xbf16, #tpu.memory_space<vmem>>, vector<384x256xbf16>
    %cst_27 = arith.constant dense<0.000000e+00> : vector<2x256xf32>
    %80 = tpu.matmul %78, %79, %cst_27 {dimension_numbers = #tpu.dot_dimension_numbers<[1], [0], [0], [1], [0, 0, 1, 1], [], []>} : vector<2x384xbf16>, vector<384x256xbf16>, vector<2x256xf32> -> vector<2x256xf32>
    %81 = arith.addf %77, %80 : vector<2x256xf32>
    %c0_28 = arith.constant 0 : index
    %c0_29 = arith.constant 0 : index
    %82 = vector.load %arg5[%c0_28, %c0_29] : memref<1x256xf32, #tpu.memory_space<vmem>>, vector<1x256xf32>
    %83 = vector.broadcast %82 : vector<1x256xf32> to vector<2x256xf32>
    %84 = arith.addf %81, %83 : vector<2x256xf32>
    %cst_30 = arith.constant 0.000000e+00 : f32
    %85 = vector.broadcast %cst_30 : f32 to vector<2x256xf32>
    %86 = arith.maximumf %84, %85 : vector<2x256xf32>
    %c0_31 = arith.constant 0 : index
    %c0_32 = arith.constant 0 : index
    %87 = vector.load %arg6[%c0_31, %c0_32] : memref<256x10xf32, #tpu.memory_space<vmem>>, vector<256x10xf32>
    %cst_33 = arith.constant dense<0.000000e+00> : vector<2x10xf32>
    %88 = tpu.matmul %86, %87, %cst_33 {dimension_numbers = #tpu.dot_dimension_numbers<[1], [0], [0], [1], [0, 0, 1, 1], [], []>} : vector<2x256xf32>, vector<256x10xf32>, vector<2x10xf32> -> vector<2x10xf32>
    %c0_34 = arith.constant 0 : index
    %c0_35 = arith.constant 0 : index
    %89 = vector.load %arg7[%c0_34, %c0_35] : memref<1x10xf32, #tpu.memory_space<vmem>>, vector<1x10xf32>
    %90 = vector.broadcast %89 : vector<1x10xf32> to vector<2x10xf32>
    %91 = arith.addf %88, %90 : vector<2x10xf32>
    %cst_36 = arith.constant dense<0xFF800000> : vector<2xf32>
    %92 = vector.multi_reduction <maximumf>, %91, %cst_36 [1] : vector<2x10xf32> to vector<2xf32>
    %93 = vector.shape_cast %92 : vector<2xf32> to vector<2x1xf32>
    %94 = vector.broadcast %93 : vector<2x1xf32> to vector<2x10xf32>
    %95 = arith.subf %91, %94 : vector<2x10xf32>
    %96 = math.exp %95 : vector<2x10xf32>
    %cst_37 = arith.constant dense<0.000000e+00> : vector<2xf32>
    %97 = vector.multi_reduction <add>, %96, %cst_37 [1] : vector<2x10xf32> to vector<2xf32>
    %98 = vector.shape_cast %97 : vector<2xf32> to vector<2x1xf32>
    %99 = math.log %98 : vector<2x1xf32>
    %100 = vector.broadcast %99 : vector<2x1xf32> to vector<2x10xf32>
    %101 = arith.subf %95, %100 : vector<2x10xf32>
    %c0_38 = arith.constant 0 : index
    %c0_39 = arith.constant 0 : index
    %102 = vector.load %arg8[%c0_38, %c0_39] : memref<2x10xf32, #tpu.memory_space<vmem>>, vector<2x10xf32>
    tpu.vector_store %arg8[%c0_38, %c0_39], %101 {strides = array<i32>} : memref<2x10xf32, #tpu.memory_space<vmem>>, vector<2x10xf32>,
    return
  }
}

</mosaic_0001>

<llo_original>
// kernel: cnn_cdist_forward.1
$region0: #{cnn_cdist_forward.1}
  #allocation0 [shape = 'u32[]', space=smem, size = 0x4, offset = 0x4, fixed_abs, tag = 'smem constant byte address 0x4 - core index']
  #allocation1 [shape = 'u32[72,128]{1,0:T(1,128)}', space=vmem, size = 0x9000, scoped, tag = 'internal scratch']
  %s0 = inlined_call_operand.vmem [shape: s32[64,1], index: 0, kind: input, shape index: {}]
  %s1 = inlined_call_operand.vmem [shape: bf16[160,384], index: 1, kind: input, shape index: {}]
  %s2 = inlined_call_operand.vmem [shape: f32[1,384], index: 2, kind: input, shape index: {}]
  %s3 = inlined_call_operand.hbm [shape: bf16[384,256], index: 3, kind: input, shape index: {}]
  %s4 = inlined_call_operand.hbm [shape: bf16[384,256], index: 4, kind: input, shape index: {}]
  %s5 = inlined_call_operand.vmem [shape: f32[1,256], index: 5, kind: input, shape index: {}]
  %s6 = inlined_call_operand.vmem [shape: f32[256,10], index: 6, kind: input, shape index: {}]
  %s7 = inlined_call_operand.vmem [shape: f32[1,10], index: 7, kind: input, shape index: {}]
  %s8 = inlined_call_operand.hbm [shape: f32[2,10], index: 8, kind: output, shape index: {}]
  %s9 = sld [smem:[#allocation0]]
  $region50: #{cnn_cdist_forward.1} parent=0
    _
  %s11 = ssub.s32 1, %s9
  %s12 = scalar_select 0, %s11, %s9
  $region1: #{cnn_cdist_forward.1} parent=0
    #allocation2 [shape = 'u8[196608]{0}', space=vmem, size = 0x30000, scoped, tag = 'input window, operand 3, single buffered']
    #allocation3 [shape = 's32[1]{0}', space=sflag, size = 0x4, scoped, tag = 'scoped memory for cnn_cdist_forward.1']
    #allocation4 [shape = 's32[1]{0}', space=sflag, size = 0x4, scoped, tag = 'scoped memory for cnn_cdist_forward.1']
    #allocation5 [shape = 'u8[196608]{0}', space=vmem, size = 0x30000, scoped, tag = 'input window, operand 4, single buffered']
    #allocation6 [shape = 's32[1]{0}', space=sflag, size = 0x4, scoped, tag = 'scoped memory for cnn_cdist_forward.1']
    #allocation7 [shape = 'u8[1024]{0}', space=vmem, size = 0x400, scoped, tag = 'output window, operand 0, single buffered']
    %13 = vsyncpa [#allocation3], 0
    %14 = vsyncpa [#allocation6], 0
    %15 = vsyncpa [#allocation4], 0
    // Predicated region
    $region2: #{cnn_cdist_forward.1} parent=1 // pred_check
      _
    $region3: #{cnn_cdist_forward.1} parent=1 // pred_check_branch
      %17 = sbr.rel (0) target = $region5
    $region4: #{cnn_cdist_forward.1} parent=1 // pred_region
      _
    $region5: #{cnn_cdist_forward.1} parent=1 // pred_fallthru
      _
    // Predicated region
    $region6: #{cnn_cdist_forward.1} parent=1 // pred_check
      _
    $region7: #{cnn_cdist_forward.1} parent=1 // pred_check_branch
      %19 = sbr.rel (0) target = $region9
    $region8: #{cnn_cdist_forward.1} parent=1 // pred_region
      _
    $region9: #{cnn_cdist_forward.1} parent=1 // pred_fallthru
      _
    // Predicated region
    $region10: #{cnn_cdist_forward.1} parent=1 // pred_check
      _
    $region11: #{cnn_cdist_forward.1} parent=1 // pred_check_branch
      %21 = sbr.rel (0) target = $region13
    $region12: #{cnn_cdist_forward.1} parent=1 // pred_region
      _
    $region13: #{cnn_cdist_forward.1} parent=1 // pred_fallthru
      _
    // Predicated region
    $region14: #{cnn_cdist_forward.1} parent=1 // pred_check
      _
    $region15: #{cnn_cdist_forward.1} parent=1 // pred_check_branch
      %23 = sbr.rel (0) target = $region17
    $region16: #{cnn_cdist_forward.1} parent=1 // pred_region
      %25 = vsyncadd [#allocation3], 0
      %s26 = sshll.u32 %s3, 4
      %s27 = int_to_ptr.hbm [resolvable:$true] %s26
      %s28 = sshll.u32 [#allocation2], 4
      %s29 = int_to_ptr.vmem [resolvable:$true] %s28
      %34 = dma.hbm_to_vmem [thread:$0]  %s27, 6144, %s29, [#allocation3], 128, 128, 8
    $region17: #{cnn_cdist_forward.1} parent=1 // pred_fallthru
      _
    // Predicated region
    $region18: #{cnn_cdist_forward.1} parent=1 // pred_check
      _
    $region19: #{cnn_cdist_forward.1} parent=1 // pred_check_branch
      %36 = sbr.rel (0) target = $region21
    $region20: #{cnn_cdist_forward.1} parent=1 // pred_region
      %38 = vsyncadd [#allocation6], 0
      %s39 = sshll.u32 %s4, 4
      %s40 = int_to_ptr.hbm [resolvable:$true] %s39
      %s41 = sshll.u32 [#allocation5], 4
      %s42 = int_to_ptr.vmem [resolvable:$true] %s41
      %47 = dma.hbm_to_vmem [thread:$0]  %s40, 6144, %s42, [#allocation6], 128, 128, 8
    $region21: #{cnn_cdist_forward.1} parent=1 // pred_fallthru
      _
    // Predicated region
    $region22: #{cnn_cdist_forward.1} parent=1 // pred_check
      _
    $region23: #{cnn_cdist_forward.1} parent=1 // pred_check_branch
      %49 = sbr.rel (0) target = $region25
    $region24: #{cnn_cdist_forward.1} parent=1 // pred_region
      _
    $region25: #{cnn_cdist_forward.1} parent=1 // pred_fallthru
      _
    // Predicated region
    $region26: #{cnn_cdist_forward.1} parent=1 // pred_check
      _
    $region27: #{cnn_cdist_forward.1} parent=1 // pred_check_branch
      %51 = sbr.rel (0) target = $region29
    $region28: #{cnn_cdist_forward.1} parent=1 // pred_region
      _
    $region29: #{cnn_cdist_forward.1} parent=1 // pred_fallthru
      _
    // Predicated region
    $region30: #{cnn_cdist_forward.1} parent=1 // pred_check
      _
    $region31: #{cnn_cdist_forward.1} parent=1 // pred_check_branch
      %53 = sbr.rel (0) target = $region33
    $region32: #{cnn_cdist_forward.1} parent=1 // pred_region
      _
    $region33: #{cnn_cdist_forward.1} parent=1 // pred_fallthru
      _
    // Predicated region
    $region34: #{cnn_cdist_forward.1} parent=1 // pred_check
      _
    $region35: #{cnn_cdist_forward.1} parent=1 // pred_check_branch
      %55 = sbr.rel (0) target = $region37
    $region36: #{cnn_cdist_forward.1} parent=1 // pred_region
      %57 = dma.done [#allocation3], 6144
    $region37: #{cnn_cdist_forward.1} parent=1 // pred_fallthru
      _
    // Predicated region
    $region38: #{cnn_cdist_forward.1} parent=1 // pred_check
      _
    $region39: #{cnn_cdist_forward.1} parent=1 // pred_check_branch
      %59 = sbr.rel (0) target = $region41
    $region40: #{cnn_cdist_forward.1} parent=1 // pred_region
      %61 = dma.done [#allocation6], 6144
    $region41: #{cnn_cdist_forward.1} parent=1 // pred_fallthru
      _
    %v63 = vld [vmem:[%s0] sm:$0xff]
    %v64 = vld [vmem:[%s0 + $0x8] sm:$0xff]
    %v65 = vld [vmem:[%s0 + $0x10] sm:$0xff]
    %v66 = vld [vmem:[%s0 + $0x18] sm:$0xff]
    %v67 = vld [vmem:[%s0 + $0x20] sm:$0xff]
    %v68 = vld [vmem:[%s0 + $0x28] sm:$0xff]
    %v69 = vld [vmem:[%s0 + $0x30] sm:$0xff]
    %v70 = vld [vmem:[%s0 + $0x38] sm:$0xff]
    %v71 = vlaneseq
    %v72 = vand.u32 %v71, 127
    %73 = vset.pattern.permute.xlu0 0
    %74 = vperm.xlu0 %73, %v63
    %v75 = vpop.permute.xlu0 %74
    %76 = vset.pattern.permute.xlu0 0
    %77 = vperm.xlu0 %76, %v64
    %v78 = vpop.permute.xlu0 %77
    %79 = vset.pattern.permute.xlu0 0
    %80 = vperm.xlu0 %79, %v65
    %v81 = vpop.permute.xlu0 %80
    %82 = vset.pattern.permute.xlu0 0
    %83 = vperm.xlu0 %82, %v66
    %v84 = vpop.permute.xlu0 %83
    %85 = vset.pattern.permute.xlu0 0
    %86 = vperm.xlu0 %85, %v67
    %v87 = vpop.permute.xlu0 %86
    %88 = vset.pattern.permute.xlu0 0
    %89 = vperm.xlu0 %88, %v68
    %v90 = vpop.permute.xlu0 %89
    %91 = vset.pattern.permute.xlu0 0
    %92 = vperm.xlu0 %91, %v69
    %v93 = vpop.permute.xlu0 %92
    %94 = vset.pattern.permute.xlu0 0
    %95 = vperm.xlu0 %94, %v70
    %v96 = vpop.permute.xlu0 %95
    %vm97 = vcmp.eq.s32.totalorder %v75, %v72
    %vm98 = vcmp.eq.s32.totalorder %v78, %v72
    %vm99 = vcmp.eq.s32.totalorder %v81, %v72
    %vm100 = vcmp.eq.s32.totalorder %v84, %v72
    %vm101 = vcmp.eq.s32.totalorder %v87, %v72
    %vm102 = vcmp.eq.s32.totalorder %v90, %v72
    %vm103 = vcmp.eq.s32.totalorder %v93, %v72
    %vm104 = vcmp.eq.s32.totalorder %v96, %v72
    %v105 = vsel %vm97, 1.0, 0.0
    %v106 = vsel %vm98, 1.0, 0.0
    %v107 = vsel %vm99, 1.0, 0.0
    %v108 = vsel %vm100, 1.0, 0.0
    %v109 = vsel %vm101, 1.0, 0.0
    %v110 = vsel %vm102, 1.0, 0.0
    %v111 = vsel %vm103, 1.0, 0.0
    %v112 = vsel %vm104, 1.0, 0.0
    %vm113 = vcmask 1046528
    %v114 = vrot.slane %v63, 1
    %v115 = vrot.slane %v64, 1
    %v116 = vsel %vm113, %v114, %v115
    %v117 = vrot.slane %v65, 1
    %v118 = vsel %vm113, %v115, %v117
    %v119 = vrot.slane %v66, 1
    %v120 = vsel %vm113, %v117, %v119
    %v121 = vrot.slane %v67, 1
    %v122 = vsel %vm113, %v119, %v121
    %v123 = vrot.slane %v68, 1
    %v124 = vsel %vm113, %v121, %v123
    %v125 = vrot.slane %v69, 1
    %v126 = vsel %vm113, %v123, %v125
    %v127 = vrot.slane %v70, 1
    %v128 = vsel %vm113, %v125, %v127
    %v129 = vsel %vm113, %v127, %v114
    %130 = vset.pattern.permute.xlu0 0
    %131 = vperm.xlu0 %130, %v116
    %v132 = vpop.permute.xlu0 %131
    %133 = vset.pattern.permute.xlu0 0
    %134 = vperm.xlu0 %133, %v118
    %v135 = vpop.permute.xlu0 %134
    %136 = vset.pattern.permute.xlu0 0
    %137 = vperm.xlu0 %136, %v120
    %v138 = vpop.permute.xlu0 %137
    %139 = vset.pattern.permute.xlu0 0
    %140 = vperm.xlu0 %139, %v122
    %v141 = vpop.permute.xlu0 %140
    %142 = vset.pattern.permute.xlu0 0
    %143 = vperm.xlu0 %142, %v124
    %v144 = vpop.permute.xlu0 %143
    %145 = vset.pattern.permute.xlu0 0
    %146 = vperm.xlu0 %145, %v126
    %v147 = vpop.permute.xlu0 %146
    %148 = vset.pattern.permute.xlu0 0
    %149 = vperm.xlu0 %148, %v128
    %v150 = vpop.permute.xlu0 %149
    %151 = vset.pattern.permute.xlu0 0
    %152 = vperm.xlu0 %151, %v129
    %v153 = vpop.permute.xlu0 %152
    %vm154 = vcmp.eq.s32.totalorder %v132, %v72
    %vm155 = vcmp.eq.s32.totalorder %v135, %v72
    %vm156 = vcmp.eq.s32.totalorder %v138, %v72
    %vm157 = vcmp.eq.s32.totalorder %v141, %v72
    %vm158 = vcmp.eq.s32.totalorder %v144, %v72
    %vm159 = vcmp.eq.s32.totalorder %v147, %v72
    %vm160 = vcmp.eq.s32.totalorder %v150, %v72
    %vm161 = vcmp.eq.s32.totalorder %v153, %v72
    %v162 = vsel %vm154, 1.0, 0.0
    %v163 = vsel %vm155, 1.0, 0.0
    %v164 = vsel %vm156, 1.0, 0.0
    %v165 = vsel %vm157, 1.0, 0.0
    %v166 = vsel %vm158, 1.0, 0.0
    %v167 = vsel %vm159, 1.0, 0.0
    %v168 = vsel %vm160, 1.0, 0.0
    %v169 = vsel %vm161, 1.0, 0.0
    %vm170 = vcmask 1045504
    %v171 = vrot.slane %v63, 2
    %v172 = vrot.slane %v64, 2
    %v173 = vsel %vm170, %v171, %v172
    %v174 = vrot.slane %v65, 2
    %v175 = vsel %vm170, %v172, %v174
    %v176 = vrot.slane %v66, 2
    %v177 = vsel %vm170, %v174, %v176
    %v178 = vrot.slane %v67, 2
    %v179 = vsel %vm170, %v176, %v178
    %v180 = vrot.slane %v68, 2
    %v181 = vsel %vm170, %v178, %v180
    %v182 = vrot.slane %v69, 2
    %v183 = vsel %vm170, %v180, %v182
    %v184 = vrot.slane %v70, 2
    %v185 = vsel %vm170, %v182, %v184
    %v186 = vsel %vm170, %v184, %v171
    %187 = vset.pattern.permute.xlu0 0
    %188 = vperm.xlu0 %187, %v173
    %v189 = vpop.permute.xlu0 %188
    %190 = vset.pattern.permute.xlu0 0
    %191 = vperm.xlu0 %190, %v175
    %v192 = vpop.permute.xlu0 %191
    %193 = vset.pattern.permute.xlu0 0
    %194 = vperm.xlu0 %193, %v177
    %v195 = vpop.permute.xlu0 %194
    %196 = vset.pattern.permute.xlu0 0
    %197 = vperm.xlu0 %196, %v179
    %v198 = vpop.permute.xlu0 %197
    %199 = vset.pattern.permute.xlu0 0
    %200 = vperm.xlu0 %199, %v181
    %v201 = vpop.permute.xlu0 %200
    %202 = vset.pattern.permute.xlu0 0
    %203 = vperm.xlu0 %202, %v183
    %v204 = vpop.permute.xlu0 %203
    %205 = vset.pattern.permute.xlu0 0
    %206 = vperm.xlu0 %205, %v185
    %v207 = vpop.permute.xlu0 %206
    %208 = vset.pattern.permute.xlu0 0
    %209 = vperm.xlu0 %208, %v186
    %v210 = vpop.permute.xlu0 %209
    %vm211 = vcmp.eq.s32.totalorder %v189, %v72
    %vm212 = vcmp.eq.s32.totalorder %v192, %v72
    %vm213 = vcmp.eq.s32.totalorder %v195, %v72
    %vm214 = vcmp.eq.s32.totalorder %v198, %v72
    %vm215 = vcmp.eq.s32.totalorder %v201, %v72
    %vm216 = vcmp.eq.s32.totalorder %v204, %v72
    %vm217 = vcmp.eq.s32.totalorder %v207, %v72
    %vm218 = vcmp.eq.s32.totalorder %v210, %v72
    %v219 = vsel %vm211, 1.0, 0.0
    %v220 = vsel %vm212, 1.0, 0.0
    %v221 = vsel %vm213, 1.0, 0.0
    %v222 = vsel %vm214, 1.0, 0.0
    %v223 = vsel %vm215, 1.0, 0.0
    %v224 = vsel %vm216, 1.0, 0.0
    %v225 = vsel %vm217, 1.0, 0.0
    %v226 = vsel %vm218, 1.0, 0.0
    %vm227 = vcmask 1044480
    %v228 = vrot.slane %v63, 3
    %v229 = vrot.slane %v64, 3
    %v230 = vsel %vm227, %v228, %v229
    %v231 = vrot.slane %v65, 3
    %v232 = vsel %vm227, %v229, %v231
    %v233 = vrot.slane %v66, 3
    %v234 = vsel %vm227, %v231, %v233
    %v235 = vrot.slane %v67, 3
    %v236 = vsel %vm227, %v233, %v235
    %v237 = vrot.slane %v68, 3
    %v238 = vsel %vm227, %v235, %v237
    %v239 = vrot.slane %v69, 3
    %v240 = vsel %vm227, %v237, %v239
    %v241 = vrot.slane %v70, 3
    %v242 = vsel %vm227, %v239, %v241
    %v243 = vsel %vm227, %v241, %v228
    %244 = vset.pattern.permute.xlu0 0
    %245 = vperm.xlu0 %244, %v230
    %v246 = vpop.permute.xlu0 %245
    %247 = vset.pattern.permute.xlu0 0
    %248 = vperm.xlu0 %247, %v232
    %v249 = vpop.permute.xlu0 %248
    %250 = vset.pattern.permute.xlu0 0
    %251 = vperm.xlu0 %250, %v234
    %v252 = vpop.permute.xlu0 %251
    %253 = vset.pattern.permute.xlu0 0
    %254 = vperm.xlu0 %253, %v236
    %v255 = vpop.permute.xlu0 %254
    %256 = vset.pattern.permute.xlu0 0
    %257 = vperm.xlu0 %256, %v238
    %v258 = vpop.permute.xlu0 %257
    %259 = vset.pattern.permute.xlu0 0
    %260 = vperm.xlu0 %259, %v240
    %v261 = vpop.permute.xlu0 %260
    %262 = vset.pattern.permute.xlu0 0
    %263 = vperm.xlu0 %262, %v242
    %v264 = vpop.permute.xlu0 %263
    %265 = vset.pattern.permute.xlu0 0
    %266 = vperm.xlu0 %265, %v243
    %v267 = vpop.permute.xlu0 %266
    %vm268 = vcmp.eq.s32.totalorder %v246, %v72
    %vm269 = vcmp.eq.s32.totalorder %v249, %v72
    %vm270 = vcmp.eq.s32.totalorder %v252, %v72
    %vm271 = vcmp.eq.s32.totalorder %v255, %v72
    %vm272 = vcmp.eq.s32.totalorder %v258, %v72
    %vm273 = vcmp.eq.s32.totalorder %v261, %v72
    %vm274 = vcmp.eq.s32.totalorder %v264, %v72
    %vm275 = vcmp.eq.s32.totalorder %v267, %v72
    %v276 = vsel %vm268, 1.0, 0.0
    %v277 = vsel %vm269, 1.0, 0.0
    %v278 = vsel %vm270, 1.0, 0.0
    %v279 = vsel %vm271, 1.0, 0.0
    %v280 = vsel %vm272, 1.0, 0.0
    %v281 = vsel %vm273, 1.0, 0.0
    %v282 = vsel %vm274, 1.0, 0.0
    %v283 = vsel %vm275, 1.0, 0.0
    %vm284 = vcmask 1043456
    %v285 = vrot.slane %v63, 4
    %v286 = vrot.slane %v64, 4
    %v287 = vsel %vm284, %v285, %v286
    %v288 = vrot.slane %v65, 4
    %v289 = vsel %vm284, %v286, %v288
    %v290 = vrot.slane %v66, 4
    %v291 = vsel %vm284, %v288, %v290
    %v292 = vrot.slane %v67, 4
    %v293 = vsel %vm284, %v290, %v292
    %v294 = vrot.slane %v68, 4
    %v295 = vsel %vm284, %v292, %v294
    %v296 = vrot.slane %v69, 4
    %v297 = vsel %vm284, %v294, %v296
    %v298 = vrot.slane %v70, 4
    %v299 = vsel %vm284, %v296, %v298
    %v300 = vsel %vm284, %v298, %v285
    %301 = vset.pattern.permute.xlu0 0
    %302 = vperm.xlu0 %301, %v287
    %v303 = vpop.permute.xlu0 %302
    %304 = vset.pattern.permute.xlu0 0
    %305 = vperm.xlu0 %304, %v289
    %v306 = vpop.permute.xlu0 %305
    %307 = vset.pattern.permute.xlu0 0
    %308 = vperm.xlu0 %307, %v291
    %v309 = vpop.permute.xlu0 %308
    %310 = vset.pattern.permute.xlu0 0
    %311 = vperm.xlu0 %310, %v293
    %v312 = vpop.permute.xlu0 %311
    %313 = vset.pattern.permute.xlu0 0
    %314 = vperm.xlu0 %313, %v295
    %v315 = vpop.permute.xlu0 %314
    %316 = vset.pattern.permute.xlu0 0
    %317 = vperm.xlu0 %316, %v297
    %v318 = vpop.permute.xlu0 %317
    %319 = vset.pattern.permute.xlu0 0
    %320 = vperm.xlu0 %319, %v299
    %v321 = vpop.permute.xlu0 %320
    %322 = vset.pattern.permute.xlu0 0
    %323 = vperm.xlu0 %322, %v300
    %v324 = vpop.permute.xlu0 %323
    %vm325 = vcmp.eq.s32.totalorder %v303, %v72
    %vm326 = vcmp.eq.s32.totalorder %v306, %v72
    %vm327 = vcmp.eq.s32.totalorder %v309, %v72
    %vm328 = vcmp.eq.s32.totalorder %v312, %v72
    %vm329 = vcmp.eq.s32.totalorder %v315, %v72
    %vm330 = vcmp.eq.s32.totalorder %v318, %v72
    %vm331 = vcmp.eq.s32.totalorder %v321, %v72
    %vm332 = vcmp.eq.s32.totalorder %v324, %v72
    %v333 = vsel %vm325, 1.0, 0.0
    %v334 = vsel %vm326, 1.0, 0.0
    %v335 = vsel %vm327, 1.0, 0.0
    %v336 = vsel %vm328, 1.0, 0.0
    %v337 = vsel %vm329, 1.0, 0.0
    %v338 = vsel %vm330, 1.0, 0.0
    %v339 = vsel %vm331, 1.0, 0.0
    %v340 = vsel %vm332, 1.0, 0.0
    %349 = vrot.lane.b32.xlu0 %v162, 32
    %v350 = vpop.permute.xlu0 %349
    %351 = vrot.lane.b32.xlu0 %v163, 32
    %v352 = vpop.permute.xlu0 %351
    %353 = vrot.lane.b32.xlu0 %v164, 32
    %v354 = vpop.permute.xlu0 %353
    %355 = vrot.lane.b32.xlu0 %v165, 32
    %v356 = vpop.permute.xlu0 %355
    %357 = vrot.lane.b32.xlu0 %v166, 32
    %v358 = vpop.permute.xlu0 %357
    %359 = vrot.lane.b32.xlu0 %v167, 32
    %v360 = vpop.permute.xlu0 %359
    %361 = vrot.lane.b32.xlu0 %v168, 32
    %v362 = vpop.permute.xlu0 %361
    %363 = vrot.lane.b32.xlu0 %v169, 32
    %v364 = vpop.permute.xlu0 %363
    %381 = vrot.lane.b32.xlu0 %v219, 64
    %v382 = vpop.permute.xlu0 %381
    %383 = vrot.lane.b32.xlu0 %v220, 64
    %v384 = vpop.permute.xlu0 %383
    %385 = vrot.lane.b32.xlu0 %v221, 64
    %v386 = vpop.permute.xlu0 %385
    %387 = vrot.lane.b32.xlu0 %v222, 64
    %v388 = vpop.permute.xlu0 %387
    %389 = vrot.lane.b32.xlu0 %v223, 64
    %v390 = vpop.permute.xlu0 %389
    %391 = vrot.lane.b32.xlu0 %v224, 64
    %v392 = vpop.permute.xlu0 %391
    %393 = vrot.lane.b32.xlu0 %v225, 64
    %v394 = vpop.permute.xlu0 %393
    %395 = vrot.lane.b32.xlu0 %v226, 64
    %v396 = vpop.permute.xlu0 %395
    %413 = vrot.lane.b32.xlu0 %v276, 96
    %v414 = vpop.permute.xlu0 %413
    %415 = vrot.lane.b32.xlu0 %v277, 96
    %v416 = vpop.permute.xlu0 %415
    %417 = vrot.lane.b32.xlu0 %v278, 96
    %v418 = vpop.permute.xlu0 %417
    %419 = vrot.lane.b32.xlu0 %v279, 96
    %v420 = vpop.permute.xlu0 %419
    %421 = vrot.lane.b32.xlu0 %v280, 96
    %v422 = vpop.permute.xlu0 %421
    %423 = vrot.lane.b32.xlu0 %v281, 96
    %v424 = vpop.permute.xlu0 %423
    %425 = vrot.lane.b32.xlu0 %v282, 96
    %v426 = vpop.permute.xlu0 %425
    %427 = vrot.lane.b32.xlu0 %v283, 96
    %v428 = vpop.permute.xlu0 %427
    %vm437 = vcmask 261120
    %v438 = vsel %vm437, %v105, %v350
    %v439 = vsel %vm437, %v106, %v352
    %v440 = vsel %vm437, %v107, %v354
    %v441 = vsel %vm437, %v108, %v356
    %v442 = vsel %vm437, %v109, %v358
    %v443 = vsel %vm437, %v110, %v360
    %v444 = vsel %vm437, %v111, %v362
    %v445 = vsel %vm437, %v112, %v364
    %vm446 = vcmask 523264
    %v447 = vsel %vm446, %v438, %v382
    %v448 = vsel %vm446, %v439, %v384
    %v449 = vsel %vm446, %v440, %v386
    %v450 = vsel %vm446, %v441, %v388
    %v451 = vsel %vm446, %v442, %v390
    %v452 = vsel %vm446, %v443, %v392
    %v453 = vsel %vm446, %v444, %v394
    %v454 = vsel %vm446, %v445, %v396
    %vm455 = vcmask 785408
    %v456 = vsel %vm455, %v447, %v414
    %v457 = vsel %vm455, %v448, %v416
    %v458 = vsel %vm455, %v449, %v418
    %v459 = vsel %vm455, %v450, %v420
    %v460 = vsel %vm455, %v451, %v422
    %v461 = vsel %vm455, %v452, %v424
    %v462 = vsel %vm455, %v453, %v426
    %v463 = vsel %vm455, %v454, %v428
    %v464 = vpack.c.bf16 %v457, %v456
    %v465 = vpack.c.bf16 %v334, %v333
    %v466 = vpack.c.bf16 %v459, %v458
    %v467 = vpack.c.bf16 %v336, %v335
    %v468 = vpack.c.bf16 %v461, %v460
    %v469 = vpack.c.bf16 %v338, %v337
    %v470 = vpack.c.bf16 %v463, %v462
    %v471 = vpack.c.bf16 %v340, %v339
    %v472 = vld [vmem:[%s1] sm:$0xff]
    %v473 = vld [vmem:[%s1 + $0x8] sm:$0xf]
    %v474 = vld [vmem:[%s1 + $0xc] sm:$0xff]
    %v475 = vld [vmem:[%s1 + $0x14] sm:$0xf]
    %v476 = vld [vmem:[%s1 + $0x18] sm:$0xff]
    %v477 = vld [vmem:[%s1 + $0x20] sm:$0xf]
    %v478 = vld [vmem:[%s1 + $0x24] sm:$0xff]
    %v479 = vld [vmem:[%s1 + $0x2c] sm:$0xf]
    %v480 = vld [vmem:[%s1 + $0x30] sm:$0xff]
    %v481 = vld [vmem:[%s1 + $0x38] sm:$0xf]
    %v482 = vld [vmem:[%s1 + $0x3c] sm:$0xff]
    %v483 = vld [vmem:[%s1 + $0x44] sm:$0xf]
    %v484 = vld [vmem:[%s1 + $0x48] sm:$0xff]
    %v485 = vld [vmem:[%s1 + $0x50] sm:$0xf]
    %v486 = vld [vmem:[%s1 + $0x54] sm:$0xff]
    %v487 = vld [vmem:[%s1 + $0x5c] sm:$0xf]
    %v488 = vld [vmem:[%s1 + $0x60] sm:$0xff]
    %v489 = vld [vmem:[%s1 + $0x68] sm:$0xf]
    %v490 = vld [vmem:[%s1 + $0x6c] sm:$0xff]
    %v491 = vld [vmem:[%s1 + $0x74] sm:$0xf]
    %v492 = vld [vmem:[%s1 + $0x78] sm:$0xff]
    %v493 = vld [vmem:[%s1 + $0x80] sm:$0xf]
    %v494 = vld [vmem:[%s1 + $0x84] sm:$0xff]
    %v495 = vld [vmem:[%s1 + $0x8c] sm:$0xf]
    %v496 = vld [vmem:[%s1 + $0x90] sm:$0xff]
    %v497 = vld [vmem:[%s1 + $0x98] sm:$0xf]
    %v498 = vld [vmem:[%s1 + $0x9c] sm:$0xff]
    %v499 = vld [vmem:[%s1 + $0xa4] sm:$0xf]
    %v500 = vld [vmem:[%s1 + $0xa8] sm:$0xff]
    %v501 = vld [vmem:[%s1 + $0xb0] sm:$0xf]
    %v502 = vld [vmem:[%s1 + $0xb4] sm:$0xff]
    %v503 = vld [vmem:[%s1 + $0xbc] sm:$0xf]
    %v504 = vld [vmem:[%s1 + $0xc0] sm:$0xff]
    %v505 = vld [vmem:[%s1 + $0xc8] sm:$0xf]
    %v506 = vld [vmem:[%s1 + $0xcc] sm:$0xff]
    %v507 = vld [vmem:[%s1 + $0xd4] sm:$0xf]
    %v508 = vld [vmem:[%s1 + $0xd8] sm:$0xff]
    %v509 = vld [vmem:[%s1 + $0xe0] sm:$0xf]
    %v510 = vld [vmem:[%s1 + $0xe4] sm:$0xff]
    %v511 = vld [vmem:[%s1 + $0xec] sm:$0xf]
    %v512 = vld [vmem:[%s2] sm:$0x7]
    %v514 = vperm.slane %v512, 0
    %v515 = vperm.slane %v512, 1
    %v516 = vperm.slane %v512, 2
    %v560 = vunpack.c.l.b16 %v472
    %v561 = vunpack.c.h.b16 %v472
    %v562 = vunpack.c.l.b16 %v473
    %v563 = vunpack.c.l.b16 %v474
    %v564 = vunpack.c.h.b16 %v474
    %v565 = vunpack.c.l.b16 %v475
    %v566 = vunpack.c.l.b16 %v476
    %v567 = vunpack.c.h.b16 %v476
    %v568 = vunpack.c.l.b16 %v477
    %v569 = vunpack.c.l.b16 %v478
    %v570 = vunpack.c.h.b16 %v478
    %v571 = vunpack.c.l.b16 %v479
    %v572 = vunpack.c.l.b16 %v480
    %v573 = vunpack.c.h.b16 %v480
    %v574 = vunpack.c.l.b16 %v481
    %v575 = vunpack.c.l.b16 %v482
    %v576 = vunpack.c.h.b16 %v482
    %v577 = vunpack.c.l.b16 %v483
    %v578 = vunpack.c.l.b16 %v484
    %v579 = vunpack.c.h.b16 %v484
    %v580 = vunpack.c.l.b16 %v485
    %v581 = vunpack.c.l.b16 %v486
    %v582 = vunpack.c.h.b16 %v486
    %v583 = vunpack.c.l.b16 %v487
    %v584 = vunpack.c.l.b16 %v488
    %v585 = vunpack.c.h.b16 %v488
    %v586 = vunpack.c.l.b16 %v489
    %v587 = vunpack.c.l.b16 %v490
    %v588 = vunpack.c.h.b16 %v490
    %v589 = vunpack.c.l.b16 %v491
    %v590 = vunpack.c.l.b16 %v492
    %v591 = vunpack.c.h.b16 %v492
    %v592 = vunpack.c.l.b16 %v493
    %v593 = vunpack.c.l.b16 %v494
    %v594 = vunpack.c.h.b16 %v494
    %v595 = vunpack.c.l.b16 %v495
    %v596 = vunpack.c.l.b16 %v496
    %v597 = vunpack.c.h.b16 %v496
    %v598 = vunpack.c.l.b16 %v497
    %v599 = vunpack.c.l.b16 %v498
    %v600 = vunpack.c.h.b16 %v498
    %v601 = vunpack.c.l.b16 %v499
    %v602 = vunpack.c.l.b16 %v500
    %v603 = vunpack.c.h.b16 %v500
    %v604 = vunpack.c.l.b16 %v501
    %v605 = vunpack.c.l.b16 %v502
    %v606 = vunpack.c.h.b16 %v502
    %v607 = vunpack.c.l.b16 %v503
    %v608 = vunpack.c.l.b16 %v504
    %v609 = vunpack.c.h.b16 %v504
    %v610 = vunpack.c.l.b16 %v505
    %v611 = vunpack.c.l.b16 %v506
    %v612 = vunpack.c.h.b16 %v506
    %v613 = vunpack.c.l.b16 %v507
    %v614 = vunpack.c.l.b16 %v508
    %v615 = vunpack.c.h.b16 %v508
    %v616 = vunpack.c.l.b16 %v509
    %v617 = vunpack.c.l.b16 %v510
    %v618 = vunpack.c.h.b16 %v510
    %v619 = vunpack.c.l.b16 %v511
    %v620 = vpack.c.b16 %v563, %v560
    %v621 = vpack.c.b16 %v564, %v561
    %v622 = vpack.c.b16 %v565, %v562
    %v623 = vpack.c.b16 %v569, %v566
    %v624 = vpack.c.b16 %v570, %v567
    %v625 = vpack.c.b16 %v571, %v568
    %v626 = vpack.c.b16 %v575, %v572
    %v627 = vpack.c.b16 %v576, %v573
    %v628 = vpack.c.b16 %v577, %v574
    %v629 = vpack.c.b16 %v581, %v578
    %v630 = vpack.c.b16 %v582, %v579
    %v631 = vpack.c.b16 %v583, %v580
    %v632 = vpack.c.b16 %v587, %v584
    %v633 = vpack.c.b16 %v588, %v585
    %v634 = vpack.c.b16 %v589, %v586
    %v635 = vpack.c.b16 %v593, %v590
    %v636 = vpack.c.b16 %v594, %v591
    %v637 = vpack.c.b16 %v595, %v592
    %v638 = vpack.c.b16 %v599, %v596
    %v639 = vpack.c.b16 %v600, %v597
    %v640 = vpack.c.b16 %v601, %v598
    %v641 = vpack.c.b16 %v605, %v602
    %v642 = vpack.c.b16 %v606, %v603
    %v643 = vpack.c.b16 %v607, %v604
    %v644 = vpack.c.b16 %v611, %v608
    %v645 = vpack.c.b16 %v612, %v609
    %v646 = vpack.c.b16 %v613, %v610
    %v647 = vpack.c.b16 %v617, %v614
    %v648 = vpack.c.b16 %v618, %v615
    %v649 = vpack.c.b16 %v619, %v616
    %v681 = vsel %vm437, %v465, 0
    %v684 = vsel %vm437, %v467, 0
    %v687 = vsel %vm437, %v469, 0
    %v690 = vsel %vm437, %v471, 0
    %692 = vmatpush.bf16.msra.mxu0 %v641
    %693 = vmatpush.bf16.msra.mxu0 %v638
    %694 = vmatpush.bf16.msra.mxu0 %v635
    %695 = vmatpush.bf16.msra.mxu0 %v632
    %696 = vmatpush.bf16.msra.mxu0 %v629
    %697 = vmatpush.bf16.msra.mxu0 %v626
    %698 = vmatpush.bf16.msra.mxu0 %v623
    %699 = vmatpush.bf16.msra.mxu0 %v620
    %700 = vmatmul.bf16.gmra.mxu0 %v464
    %v701 = vpop.f32.mrf.mxu0
    %v702 = vadd.f32 %v514, %v701
    %v703 = vpop.f32.mrf.mxu0
    %v704 = vadd.f32 %v514, %v703
    %705 = vmatmul.bf16.gmra.mxu0 %v466
    %v706 = vpop.f32.mrf.mxu0
    %v707 = vadd.f32 %v514, %v706
    %v708 = vpop.f32.mrf.mxu0
    %v709 = vadd.f32 %v514, %v708
    %710 = vmatmul.bf16.gmra.mxu0 %v468
    %v711 = vpop.f32.mrf.mxu0
    %v712 = vadd.f32 %v514, %v711
    %v713 = vpop.f32.mrf.mxu0
    %v714 = vadd.f32 %v514, %v713
    %715 = vmatmul.bf16.gmra.mxu0 %v470
    %v716 = vpop.f32.mrf.mxu0
    %v717 = vadd.f32 %v514, %v716
    %v718 = vpop.f32.mrf.mxu0
    %v719 = vadd.f32 %v514, %v718
    %720 = vdwg.mxu0
    %721 = vmatpush.bf16.msra.mxu0 0
    %722 = vmatpush.bf16.msra.mxu0 0
    %723 = vmatpush.bf16.msra.mxu0 0
    %724 = vmatpush.bf16.msra.mxu0 0
    %725 = vmatpush.bf16.msra.mxu0 0
    %726 = vmatpush.bf16.msra.mxu0 0
    %727 = vmatpush.bf16.msra.mxu0 %v647
    %728 = vmatpush.bf16.msra.mxu0 %v644
    %729 = vmatmul.bf16.gmra.mxu0 %v681
    %v730 = vpop.f32.mrf.mxu0
    %v731 = vadd.f32 %v702, %v730
    %v732 = vpop.f32.mrf.mxu0
    %v733 = vadd.f32 %v704, %v732
    %734 = vmatmul.bf16.gmra.mxu0 %v684
    %v735 = vpop.f32.mrf.mxu0
    %v736 = vadd.f32 %v707, %v735
    %v737 = vpop.f32.mrf.mxu0
    %v738 = vadd.f32 %v709, %v737
    %739 = vmatmul.bf16.gmra.mxu0 %v687
    %v740 = vpop.f32.mrf.mxu0
    %v741 = vadd.f32 %v712, %v740
    %v742 = vpop.f32.mrf.mxu0
    %v743 = vadd.f32 %v714, %v742
    %744 = vmatmul.bf16.gmra.mxu0 %v690
    %v745 = vpop.f32.mrf.mxu0
    %v746 = vadd.f32 %v717, %v745
    %v747 = vpop.f32.mrf.mxu0
    %v748 = vadd.f32 %v719, %v747
    %749 = vdwg.mxu0
    %750 = vmatpush.bf16.msra.mxu0 %v642
    %751 = vmatpush.bf16.msra.mxu0 %v639
    %752 = vmatpush.bf16.msra.mxu0 %v636
    %753 = vmatpush.bf16.msra.mxu0 %v633
    %754 = vmatpush.bf16.msra.mxu0 %v630
    %755 = vmatpush.bf16.msra.mxu0 %v627
    %756 = vmatpush.bf16.msra.mxu0 %v624
    %757 = vmatpush.bf16.msra.mxu0 %v621
    %758 = vmatmul.bf16.gmra.mxu0 %v464
    %v759 = vpop.f32.mrf.mxu0
    %v760 = vadd.f32 %v515, %v759
    %v761 = vpop.f32.mrf.mxu0
    %v762 = vadd.f32 %v515, %v761
    %763 = vmatmul.bf16.gmra.mxu0 %v466
    %v764 = vpop.f32.mrf.mxu0
    %v765 = vadd.f32 %v515, %v764
    %v766 = vpop.f32.mrf.mxu0
    %v767 = vadd.f32 %v515, %v766
    %768 = vmatmul.bf16.gmra.mxu0 %v468
    %v769 = vpop.f32.mrf.mxu0
    %v770 = vadd.f32 %v515, %v769
    %v771 = vpop.f32.mrf.mxu0
    %v772 = vadd.f32 %v515, %v771
    %773 = vmatmul.bf16.gmra.mxu0 %v470
    %v774 = vpop.f32.mrf.mxu0
    %v775 = vadd.f32 %v515, %v774
    %v776 = vpop.f32.mrf.mxu0
    %v777 = vadd.f32 %v515, %v776
    %778 = vdwg.mxu0
    %779 = vmatpush.bf16.msra.mxu0 0
    %780 = vmatpush.bf16.msra.mxu0 0
    %781 = vmatpush.bf16.msra.mxu0 0
    %782 = vmatpush.bf16.msra.mxu0 0
    %783 = vmatpush.bf16.msra.mxu0 0
    %784 = vmatpush.bf16.msra.mxu0 0
    %785 = vmatpush.bf16.msra.mxu0 %v648
    %786 = vmatpush.bf16.msra.mxu0 %v645
    %787 = vmatmul.bf16.gmra.mxu0 %v681
    %v788 = vpop.f32.mrf.mxu0
    %v789 = vadd.f32 %v760, %v788
    %v790 = vpop.f32.mrf.mxu0
    %v791 = vadd.f32 %v762, %v790
    %792 = vmatmul.bf16.gmra.mxu0 %v684
    %v793 = vpop.f32.mrf.mxu0
    %v794 = vadd.f32 %v765, %v793
    %v795 = vpop.f32.mrf.mxu0
    %v796 = vadd.f32 %v767, %v795
    %797 = vmatmul.bf16.gmra.mxu0 %v687
    %v798 = vpop.f32.mrf.mxu0
    %v799 = vadd.f32 %v770, %v798
    %v800 = vpop.f32.mrf.mxu0
    %v801 = vadd.f32 %v772, %v800
    %802 = vmatmul.bf16.gmra.mxu0 %v690
    %v803 = vpop.f32.mrf.mxu0
    %v804 = vadd.f32 %v775, %v803
    %v805 = vpop.f32.mrf.mxu0
    %v806 = vadd.f32 %v777, %v805
    %807 = vdwg.mxu0
    %808 = vmatpush.bf16.msra.mxu0 %v643
    %809 = vmatpush.bf16.msra.mxu0 %v640
    %810 = vmatpush.bf16.msra.mxu0 %v637
    %811 = vmatpush.bf16.msra.mxu0 %v634
    %812 = vmatpush.bf16.msra.mxu0 %v631
    %813 = vmatpush.bf16.msra.mxu0 %v628
    %814 = vmatpush.bf16.msra.mxu0 %v625
    %815 = vmatpush.bf16.msra.mxu0 %v622
    %816 = vmatmul.bf16.gmra.mxu0 %v464
    %v817 = vpop.f32.mrf.mxu0
    %v818 = vadd.f32 %v516, %v817
    %v819 = vpop.f32.mrf.mxu0
    %v820 = vadd.f32 %v516, %v819
    %821 = vmatmul.bf16.gmra.mxu0 %v466
    %v822 = vpop.f32.mrf.mxu0
    %v823 = vadd.f32 %v516, %v822
    %v824 = vpop.f32.mrf.mxu0
    %v825 = vadd.f32 %v516, %v824
    %826 = vmatmul.bf16.gmra.mxu0 %v468
    %v827 = vpop.f32.mrf.mxu0
    %v828 = vadd.f32 %v516, %v827
    %v829 = vpop.f32.mrf.mxu0
    %v830 = vadd.f32 %v516, %v829
    %831 = vmatmul.bf16.gmra.mxu0 %v470
    %v832 = vpop.f32.mrf.mxu0
    %v833 = vadd.f32 %v516, %v832
    %v834 = vpop.f32.mrf.mxu0
    %v835 = vadd.f32 %v516, %v834
    %836 = vdwg.mxu0
    %837 = vmatpush.bf16.msra.mxu0 0
    %838 = vmatpush.bf16.msra.mxu0 0
    %839 = vmatpush.bf16.msra.mxu0 0
    %840 = vmatpush.bf16.msra.mxu0 0
    %841 = vmatpush.bf16.msra.mxu0 0
    %842 = vmatpush.bf16.msra.mxu0 0
    %843 = vmatpush.bf16.msra.mxu0 %v649
    %844 = vmatpush.bf16.msra.mxu0 %v646
    %845 = vmatmul.bf16.gmra.mxu0 %v681
    %v846 = vpop.f32.mrf.mxu0
    %v847 = vadd.f32 %v818, %v846
    %v848 = vpop.f32.mrf.mxu0
    %v849 = vadd.f32 %v820, %v848
    %850 = vmatmul.bf16.gmra.mxu0 %v684
    %v851 = vpop.f32.mrf.mxu0
    %v852 = vadd.f32 %v823, %v851
    %v853 = vpop.f32.mrf.mxu0
    %v854 = vadd.f32 %v825, %v853
    %855 = vmatmul.bf16.gmra.mxu0 %v687
    %v856 = vpop.f32.mrf.mxu0
    %v857 = vadd.f32 %v828, %v856
    %v858 = vpop.f32.mrf.mxu0
    %v859 = vadd.f32 %v830, %v858
    %860 = vmatmul.bf16.gmra.mxu0 %v690
    %v861 = vpop.f32.mrf.mxu0
    %v862 = vadd.f32 %v833, %v861
    %v863 = vpop.f32.mrf.mxu0
    %v864 = vadd.f32 %v835, %v863
    %865 = vdwg.mxu0
    %v866 = vlaneseq
    %v867 = vshrl.u32 %v866, 7
    %v868 = vadd.s32 %v867, 8
    %v869 = vadd.s32 %v867, 16
    %v870 = vadd.s32 %v867, 24
    %v871 = vadd.s32 %v72, 128
    %v872 = vadd.s32 %v72, 256
    %vm873 = vcmp.lt.s32.totalorder %v72, 256
    %vm874 = vcmp.lt.s32.totalorder %v871, 256
    %vm875 = vcmp.lt.s32.totalorder %v872, 256
    %v876 = vsel %vm873, 13, 12
    %v877 = vsel %vm874, 13, 12
    %v878 = vsel %vm875, 13, 12
    %vm879 = vcmp.lt.s32.totalorder %v72, 128
    %vm880 = vcmp.lt.s32.totalorder %v871, 128
    %vm881 = vcmp.lt.s32.totalorder %v872, 128
    %v882 = vsel %vm879, 14, %v876
    %v883 = vsel %vm880, 14, %v877
    %v884 = vsel %vm881, 14, %v878
    %vm885 = vcmp.ge.s32.totalorder %v867, 16
    %vm886 = vcmp.ge.s32.totalorder %v868, 16
    %vm887 = vcmp.ge.s32.totalorder %v869, 16
    %vm888 = vcmp.ge.s32.totalorder %v870, 16
    %v889 = vadd.s32 %v882, 16
    %v890 = vadd.s32 %v883, 16
    %v891 = vadd.s32 %v884, 16
    %vm892 = vcmp.lt.s32.totalorder %v867, %v889
    %vm893 = vcmp.lt.s32.totalorder %v867, %v890
    %vm894 = vcmp.lt.s32.totalorder %v867, %v891
    %vm895 = vcmp.lt.s32.totalorder %v868, %v889
    %vm896 = vcmp.lt.s32.totalorder %v868, %v890
    %vm897 = vcmp.lt.s32.totalorder %v868, %v891
    %vm898 = vcmp.lt.s32.totalorder %v869, %v889
    %vm899 = vcmp.lt.s32.totalorder %v869, %v890
    %vm900 = vcmp.lt.s32.totalorder %v869, %v891
    %vm901 = vcmp.lt.s32.totalorder %v870, %v889
    %vm902 = vcmp.lt.s32.totalorder %v870, %v890
    %vm903 = vcmp.lt.s32.totalorder %v870, %v891
    %vm904 = vmand %vm885, %vm892
    %vm905 = vmand %vm885, %vm893
    %vm906 = vmand %vm885, %vm894
    %vm907 = vmand %vm886, %vm895
    %vm908 = vmand %vm886, %vm896
    %vm909 = vmand %vm886, %vm897
    %vm910 = vmand %vm887, %vm898
    %vm911 = vmand %vm887, %vm899
    %vm912 = vmand %vm887, %vm900
    %vm913 = vmand %vm888, %vm901
    %vm914 = vmand %vm888, %vm902
    %vm915 = vmand %vm888, %vm903
    %vm916 = vcmp.lt.s32.totalorder %v867, %v882
    %vm917 = vcmp.lt.s32.totalorder %v867, %v883
    %vm918 = vcmp.lt.s32.totalorder %v867, %v884
    %vm919 = vcmp.lt.s32.totalorder %v868, %v882
    %vm920 = vcmp.lt.s32.totalorder %v868, %v883
    %vm921 = vcmp.lt.s32.totalorder %v868, %v884
    %vm922 = vcmp.lt.s32.totalorder %v869, %v882
    %vm923 = vcmp.lt.s32.totalorder %v869, %v883
    %vm924 = vcmp.lt.s32.totalorder %v869, %v884
    %vm925 = vcmp.lt.s32.totalorder %v870, %v882
    %vm926 = vcmp.lt.s32.totalorder %v870, %v883
    %vm927 = vcmp.lt.s32.totalorder %v870, %v884
    %v928 = vsel %vm904, %v731, -inf
    %v929 = vsel %vm905, %v789, -inf
    %v930 = vsel %vm906, %v847, -inf
    %v931 = vsel %vm907, %v733, -inf
    %v932 = vsel %vm908, %v791, -inf
    %v933 = vsel %vm909, %v849, -inf
    %v934 = vsel %vm910, %v736, -inf
    %v935 = vsel %vm911, %v794, -inf
    %v936 = vsel %vm912, %v852, -inf
    %v937 = vsel %vm913, %v738, -inf
    %v938 = vsel %vm914, %v796, -inf
    %v939 = vsel %vm915, %v854, -inf
    %v940 = vsel %vm904, %v741, -inf
    %v941 = vsel %vm905, %v799, -inf
    %v942 = vsel %vm906, %v857, -inf
    %v943 = vsel %vm907, %v743, -inf
    %v944 = vsel %vm908, %v801, -inf
    %v945 = vsel %vm909, %v859, -inf
    %v946 = vsel %vm910, %v746, -inf
    %v947 = vsel %vm911, %v804, -inf
    %v948 = vsel %vm912, %v862, -inf
    %v949 = vsel %vm913, %v748, -inf
    %v950 = vsel %vm914, %v806, -inf
    %v951 = vsel %vm915, %v864, -inf
    %v952 = vmax.f32 %v928, %v931
    %v953 = vmax.f32 %v952, %v934
    %v954 = vmax.f32 %v953, %v937
    %v955 = vrot.slane %v954, 4
    %v956 = vmax.f32 %v954, %v955
    %v957 = vrot.slane %v956, 2
    %v958 = vmax.f32 %v956, %v957
    %v959 = vrot.slane %v958, 1
    %v960 = vmax.f32 %v958, %v959
    %v961 = vmax.f32 %v929, %v932
    %v962 = vmax.f32 %v961, %v935
    %v963 = vmax.f32 %v962, %v938
    %v964 = vrot.slane %v963, 4
    %v965 = vmax.f32 %v963, %v964
    %v966 = vrot.slane %v965, 2
    %v967 = vmax.f32 %v965, %v966
    %v968 = vrot.slane %v967, 1
    %v969 = vmax.f32 %v967, %v968
    %v970 = vmax.f32 %v930, %v933
    %v971 = vmax.f32 %v970, %v936
    %v972 = vmax.f32 %v971, %v939
    %v973 = vrot.slane %v972, 4
    %v974 = vmax.f32 %v972, %v973
    %v975 = vrot.slane %v974, 2
    %v976 = vmax.f32 %v974, %v975
    %v977 = vrot.slane %v976, 1
    %v978 = vmax.f32 %v976, %v977
    %v979 = vmax.f32 %v940, %v943
    %v980 = vmax.f32 %v979, %v946
    %v981 = vmax.f32 %v980, %v949
    %v982 = vrot.slane %v981, 4
    %v983 = vmax.f32 %v981, %v982
    %v984 = vrot.slane %v983, 2
    %v985 = vmax.f32 %v983, %v984
    %v986 = vrot.slane %v985, 1
    %v987 = vmax.f32 %v985, %v986
    %v988 = vmax.f32 %v941, %v944
    %v989 = vmax.f32 %v988, %v947
    %v990 = vmax.f32 %v989, %v950
    %v991 = vrot.slane %v990, 4
    %v992 = vmax.f32 %v990, %v991
    %v993 = vrot.slane %v992, 2
    %v994 = vmax.f32 %v992, %v993
    %v995 = vrot.slane %v994, 1
    %v996 = vmax.f32 %v994, %v995
    %v997 = vmax.f32 %v942, %v945
    %v998 = vmax.f32 %v997, %v948
    %v999 = vmax.f32 %v998, %v951
    %v1000 = vrot.slane %v999, 4
    %v1001 = vmax.f32 %v999, %v1000
    %v1002 = vrot.slane %v1001, 2
    %v1003 = vmax.f32 %v1001, %v1002
    %v1004 = vrot.slane %v1003, 1
    %v1005 = vmax.f32 %v1003, %v1004
    %v1006 = vmax.f32 %v960, 0.0
    %v1007 = vmax.f32 %v969, 0.0
    %v1008 = vmax.f32 %v978, 0.0
    %v1009 = vmax.f32 %v987, 0.0
    %v1010 = vmax.f32 %v996, 0.0
    %v1011 = vmax.f32 %v1005, 0.0
    %v1012 = vsel %vm916, %v731, -inf
    %v1013 = vsel %vm917, %v789, -inf
    %v1014 = vsel %vm918, %v847, -inf
    %v1015 = vsel %vm919, %v733, -inf
    %v1016 = vsel %vm920, %v791, -inf
    %v1017 = vsel %vm921, %v849, -inf
    %v1018 = vsel %vm922, %v736, -inf
    %v1019 = vsel %vm923, %v794, -inf
    %v1020 = vsel %vm924, %v852, -inf
    %v1021 = vsel %vm925, %v738, -inf
    %v1022 = vsel %vm926, %v796, -inf
    %v1023 = vsel %vm927, %v854, -inf
    %v1024 = vsel %vm916, %v741, -inf
    %v1025 = vsel %vm917, %v799, -inf
    %v1026 = vsel %vm918, %v857, -inf
    %v1027 = vsel %vm919, %v743, -inf
    %v1028 = vsel %vm920, %v801, -inf
    %v1029 = vsel %vm921, %v859, -inf
    %v1030 = vsel %vm922, %v746, -inf
    %v1031 = vsel %vm923, %v804, -inf
    %v1032 = vsel %vm924, %v862, -inf
    %v1033 = vsel %vm925, %v748, -inf
    %v1034 = vsel %vm926, %v806, -inf
    %v1035 = vsel %vm927, %v864, -inf
    %v1036 = vmax.f32 %v1012, %v1015
    %v1037 = vmax.f32 %v1036, %v1018
    %v1038 = vmax.f32 %v1037, %v1021
    %v1039 = vrot.slane %v1038, 4
    %v1040 = vmax.f32 %v1038, %v1039
    %v1041 = vrot.slane %v1040, 2
    %v1042 = vmax.f32 %v1040, %v1041
    %v1043 = vrot.slane %v1042, 1
    %v1044 = vmax.f32 %v1042, %v1043
    %v1045 = vmax.f32 %v1013, %v1016
    %v1046 = vmax.f32 %v1045, %v1019
    %v1047 = vmax.f32 %v1046, %v1022
    %v1048 = vrot.slane %v1047, 4
    %v1049 = vmax.f32 %v1047, %v1048
    %v1050 = vrot.slane %v1049, 2
    %v1051 = vmax.f32 %v1049, %v1050
    %v1052 = vrot.slane %v1051, 1
    %v1053 = vmax.f32 %v1051, %v1052
    %v1054 = vmax.f32 %v1014, %v1017
    %v1055 = vmax.f32 %v1054, %v1020
    %v1056 = vmax.f32 %v1055, %v1023
    %v1057 = vrot.slane %v1056, 4
    %v1058 = vmax.f32 %v1056, %v1057
    %v1059 = vrot.slane %v1058, 2
    %v1060 = vmax.f32 %v1058, %v1059
    %v1061 = vrot.slane %v1060, 1
    %v1062 = vmax.f32 %v1060, %v1061
    %v1063 = vmax.f32 %v1024, %v1027
    %v1064 = vmax.f32 %v1063, %v1030
    %v1065 = vmax.f32 %v1064, %v1033
    %v1066 = vrot.slane %v1065, 4
    %v1067 = vmax.f32 %v1065, %v1066
    %v1068 = vrot.slane %v1067, 2
    %v1069 = vmax.f32 %v1067, %v1068
    %v1070 = vrot.slane %v1069, 1
    %v1071 = vmax.f32 %v1069, %v1070
    %v1072 = vmax.f32 %v1025, %v1028
    %v1073 = vmax.f32 %v1072, %v1031
    %v1074 = vmax.f32 %v1073, %v1034
    %v1075 = vrot.slane %v1074, 4
    %v1076 = vmax.f32 %v1074, %v1075
    %v1077 = vrot.slane %v1076, 2
    %v1078 = vmax.f32 %v1076, %v1077
    %v1079 = vrot.slane %v1078, 1
    %v1080 = vmax.f32 %v1078, %v1079
    %v1081 = vmax.f32 %v1026, %v1029
    %v1082 = vmax.f32 %v1081, %v1032
    %v1083 = vmax.f32 %v1082, %v1035
    %v1084 = vrot.slane %v1083, 4
    %v1085 = vmax.f32 %v1083, %v1084
    %v1086 = vrot.slane %v1085, 2
    %v1087 = vmax.f32 %v1085, %v1086
    %v1088 = vrot.slane %v1087, 1
    %v1089 = vmax.f32 %v1087, %v1088
    %v1090 = vmax.f32 %v1044, 0.0
    %v1091 = vmax.f32 %v1053, 0.0
    %v1092 = vmax.f32 %v1062, 0.0
    %v1093 = vmax.f32 %v1071, 0.0
    %v1094 = vmax.f32 %v1080, 0.0
    %v1095 = vmax.f32 %v1089, 0.0
    %v1096 = vpack.c.bf16 %v1006, %v1006
    %v1097 = vpack.c.bf16 %v1007, %v1007
    %v1098 = vpack.c.bf16 %v1008, %v1008
    %v1099 = vpack.c.bf16 %v1009, %v1009
    %v1100 = vpack.c.bf16 %v1010, %v1010
    %v1101 = vpack.c.bf16 %v1011, %v1011
    %v1102 = vld [vmem:[#allocation2] sm:$0xff]
    %v1103 = vld [vmem:[#allocation2 + $0x8] sm:$0xff]
    %v1104 = vld [vmem:[#allocation2 + $0x10] sm:$0xff]
    %v1105 = vld [vmem:[#allocation2 + $0x18] sm:$0xff]
    %v1106 = vld [vmem:[#allocation2 + $0x20] sm:$0xff]
    %v1107 = vld [vmem:[#allocation2 + $0x28] sm:$0xff]
    %v1108 = vld [vmem:[#allocation2 + $0x30] sm:$0xff]
    %v1109 = vld [vmem:[#allocation2 + $0x38] sm:$0xff]
    %v1110 = vld [vmem:[#allocation2 + $0x40] sm:$0xff]
    %v1111 = vld [vmem:[#allocation2 + $0x48] sm:$0xff]
    %v1112 = vld [vmem:[#allocation2 + $0x50] sm:$0xff]
    %v1113 = vld [vmem:[#allocation2 + $0x58] sm:$0xff]
    %v1114 = vld [vmem:[#allocation2 + $0x60] sm:$0xff]
    %v1115 = vld [vmem:[#allocation2 + $0x68] sm:$0xff]
    %v1116 = vld [vmem:[#allocation2 + $0x70] sm:$0xff]
    %v1117 = vld [vmem:[#allocation2 + $0x78] sm:$0xff]
    %v1118 = vld [vmem:[#allocation2 + $0x80] sm:$0xff]
    %v1119 = vld [vmem:[#allocation2 + $0x88] sm:$0xff]
    %v1120 = vld [vmem:[#allocation2 + $0x90] sm:$0xff]
    %v1121 = vld [vmem:[#allocation2 + $0x98] sm:$0xff]
    %v1122 = vld [vmem:[#allocation2 + $0xa0] sm:$0xff]
    %v1123 = vld [vmem:[#allocation2 + $0xa8] sm:$0xff]
    %v1124 = vld [vmem:[#allocation2 + $0xb0] sm:$0xff]
    %v1125 = vld [vmem:[#allocation2 + $0xb8] sm:$0xff]
    %v1126 = vld [vmem:[#allocation2 + $0xc0] sm:$0xff]
    %v1127 = vld [vmem:[#allocation2 + $0xc8] sm:$0xff]
    %v1128 = vld [vmem:[#allocation2 + $0xd0] sm:$0xff]
    %v1129 = vld [vmem:[#allocation2 + $0xd8] sm:$0xff]
    %v1130 = vld [vmem:[#allocation2 + $0xe0] sm:$0xff]
    %v1131 = vld [vmem:[#allocation2 + $0xe8] sm:$0xff]
    %v1132 = vld [vmem:[#allocation2 + $0xf0] sm:$0xff]
    %v1133 = vld [vmem:[#allocation2 + $0xf8] sm:$0xff]
    %v1134 = vld [vmem:[#allocation2 + $0x100] sm:$0xff]
    %v1135 = vld [vmem:[#allocation2 + $0x108] sm:$0xff]
    %v1136 = vld [vmem:[#allocation2 + $0x110] sm:$0xff]
    %v1137 = vld [vmem:[#allocation2 + $0x118] sm:$0xff]
    %v1138 = vld [vmem:[#allocation2 + $0x120] sm:$0xff]
    %v1139 = vld [vmem:[#allocation2 + $0x128] sm:$0xff]
    %v1140 = vld [vmem:[#allocation2 + $0x130] sm:$0xff]
    %v1141 = vld [vmem:[#allocation2 + $0x138] sm:$0xff]
    %v1142 = vld [vmem:[#allocation2 + $0x140] sm:$0xff]
    %v1143 = vld [vmem:[#allocation2 + $0x148] sm:$0xff]
    %v1144 = vld [vmem:[#allocation2 + $0x150] sm:$0xff]
    %v1145 = vld [vmem:[#allocation2 + $0x158] sm:$0xff]
    %v1146 = vld [vmem:[#allocation2 + $0x160] sm:$0xff]
    %v1147 = vld [vmem:[#allocation2 + $0x168] sm:$0xff]
    %v1148 = vld [vmem:[#allocation2 + $0x170] sm:$0xff]
    %v1149 = vld [vmem:[#allocation2 + $0x178] sm:$0xff]
    %v1150 = vpack.c.bf16 %v1090, %v1090
    %v1151 = vpack.c.bf16 %v1091, %v1091
    %v1152 = vpack.c.bf16 %v1092, %v1092
    %v1153 = vpack.c.bf16 %v1093, %v1093
    %v1154 = vpack.c.bf16 %v1094, %v1094
    %v1155 = vpack.c.bf16 %v1095, %v1095
    %v1156 = vld [vmem:[#allocation5] sm:$0xff]
    %v1157 = vld [vmem:[#allocation5 + $0x8] sm:$0xff]
    %v1158 = vld [vmem:[#allocation5 + $0x10] sm:$0xff]
    %v1159 = vld [vmem:[#allocation5 + $0x18] sm:$0xff]
    %v1160 = vld [vmem:[#allocation5 + $0x20] sm:$0xff]
    %v1161 = vld [vmem:[#allocation5 + $0x28] sm:$0xff]
    %v1162 = vld [vmem:[#allocation5 + $0x30] sm:$0xff]
    %v1163 = vld [vmem:[#allocation5 + $0x38] sm:$0xff]
    %v1164 = vld [vmem:[#allocation5 + $0x40] sm:$0xff]
    %v1165 = vld [vmem:[#allocation5 + $0x48] sm:$0xff]
    %v1166 = vld [vmem:[#allocation5 + $0x50] sm:$0xff]
    %v1167 = vld [vmem:[#allocation5 + $0x58] sm:$0xff]
    %v1168 = vld [vmem:[#allocation5 + $0x60] sm:$0xff]
    %v1169 = vld [vmem:[#allocation5 + $0x68] sm:$0xff]
    %v1170 = vld [vmem:[#allocation5 + $0x70] sm:$0xff]
    %v1171 = vld [vmem:[#allocation5 + $0x78] sm:$0xff]
    %v1172 = vld [vmem:[#allocation5 + $0x80] sm:$0xff]
    %v1173 = vld [vmem:[#allocation5 + $0x88] sm:$0xff]
    %v1174 = vld [vmem:[#allocation5 + $0x90] sm:$0xff]
    %v1175 = vld [vmem:[#allocation5 + $0x98] sm:$0xff]
    %v1176 = vld [vmem:[#allocation5 + $0xa0] sm:$0xff]
    %v1177 = vld [vmem:[#allocation5 + $0xa8] sm:$0xff]
    %v1178 = vld [vmem:[#allocation5 + $0xb0] sm:$0xff]
    %v1179 = vld [vmem:[#allocation5 + $0xb8] sm:$0xff]
    %v1180 = vld [vmem:[#allocation5 + $0xc0] sm:$0xff]
    %v1181 = vld [vmem:[#allocation5 + $0xc8] sm:$0xff]
    %v1182 = vld [vmem:[#allocation5 + $0xd0] sm:$0xff]
    %v1183 = vld [vmem:[#allocation5 + $0xd8] sm:$0xff]
    %v1184 = vld [vmem:[#allocation5 + $0xe0] sm:$0xff]
    %v1185 = vld [vmem:[#allocation5 + $0xe8] sm:$0xff]
    %v1186 = vld [vmem:[#allocation5 + $0xf0] sm:$0xff]
    %v1187 = vld [vmem:[#allocation5 + $0xf8] sm:$0xff]
    %v1188 = vld [vmem:[#allocation5 + $0x100] sm:$0xff]
    %v1189 = vld [vmem:[#allocation5 + $0x108] sm:$0xff]
    %v1190 = vld [vmem:[#allocation5 + $0x110] sm:$0xff]
    %v1191 = vld [vmem:[#allocation5 + $0x118] sm:$0xff]
    %v1192 = vld [vmem:[#allocation5 + $0x120] sm:$0xff]
    %v1193 = vld [vmem:[#allocation5 + $0x128] sm:$0xff]
    %v1194 = vld [vmem:[#allocation5 + $0x130] sm:$0xff]
    %v1195 = vld [vmem:[#allocation5 + $0x138] sm:$0xff]
    %v1196 = vld [vmem:[#allocation5 + $0x140] sm:$0xff]
    %v1197 = vld [vmem:[#allocation5 + $0x148] sm:$0xff]
    %v1198 = vld [vmem:[#allocation5 + $0x150] sm:$0xff]
    %v1199 = vld [vmem:[#allocation5 + $0x158] sm:$0xff]
    %v1200 = vld [vmem:[#allocation5 + $0x160] sm:$0xff]
    %v1201 = vld [vmem:[#allocation5 + $0x168] sm:$0xff]
    %v1202 = vld [vmem:[#allocation5 + $0x170] sm:$0xff]
    %v1203 = vld [vmem:[#allocation5 + $0x178] sm:$0xff]
    %v1210 = vunpack.c.l.b16 %v1150
    %v1211 = vunpack.c.l.b16 %v1151
    %v1212 = vunpack.c.l.b16 %v1152
    %v1213 = vunpack.c.l.b16 %v1153
    %v1214 = vunpack.c.l.b16 %v1154
    %v1215 = vunpack.c.l.b16 %v1155
    %vm1216 = vcmask 1041409
    %v1217 = vsel %vm1216, %v1213, %v1210
    %v1218 = vsel %vm1216, %v1214, %v1211
    %v1219 = vsel %vm1216, %v1215, %v1212
    %v1220 = vpack.c.b16 %v1217, %v1217
    %v1221 = vpack.c.b16 %v1218, %v1218
    %v1222 = vpack.c.b16 %v1219, %v1219
    %v1274 = vunpack.c.l.b16 %v1156
    %v1275 = vunpack.c.h.b16 %v1156
    %v1276 = vunpack.c.l.b16 %v1157
    %v1277 = vunpack.c.h.b16 %v1157
    %v1278 = vunpack.c.l.b16 %v1158
    %v1279 = vunpack.c.h.b16 %v1158
    %v1280 = vunpack.c.l.b16 %v1159
    %v1281 = vunpack.c.h.b16 %v1159
    %v1282 = vunpack.c.l.b16 %v1160
    %v1283 = vunpack.c.h.b16 %v1160
    %v1284 = vunpack.c.l.b16 %v1161
    %v1285 = vunpack.c.h.b16 %v1161
    %v1286 = vunpack.c.l.b16 %v1162
    %v1287 = vunpack.c.h.b16 %v1162
    %v1288 = vunpack.c.l.b16 %v1163
    %v1289 = vunpack.c.h.b16 %v1163
    %v1290 = vunpack.c.l.b16 %v1164
    %v1291 = vunpack.c.h.b16 %v1164
    %v1292 = vunpack.c.l.b16 %v1165
    %v1293 = vunpack.c.h.b16 %v1165
    %v1294 = vunpack.c.l.b16 %v1166
    %v1295 = vunpack.c.h.b16 %v1166
    %v1296 = vunpack.c.l.b16 %v1167
    %v1297 = vunpack.c.h.b16 %v1167
    %v1298 = vunpack.c.l.b16 %v1168
    %v1299 = vunpack.c.h.b16 %v1168
    %v1300 = vunpack.c.l.b16 %v1169
    %v1301 = vunpack.c.h.b16 %v1169
    %v1302 = vunpack.c.l.b16 %v1170
    %v1303 = vunpack.c.h.b16 %v1170
    %v1304 = vunpack.c.l.b16 %v1171
    %v1305 = vunpack.c.h.b16 %v1171
    %v1306 = vunpack.c.l.b16 %v1172
    %v1307 = vunpack.c.h.b16 %v1172
    %v1308 = vunpack.c.l.b16 %v1173
    %v1309 = vunpack.c.h.b16 %v1173
    %v1310 = vunpack.c.l.b16 %v1174
    %v1311 = vunpack.c.h.b16 %v1174
    %v1312 = vunpack.c.l.b16 %v1175
    %v1313 = vunpack.c.h.b16 %v1175
    %v1314 = vunpack.c.l.b16 %v1176
    %v1315 = vunpack.c.h.b16 %v1176
    %v1316 = vunpack.c.l.b16 %v1177
    %v1317 = vunpack.c.h.b16 %v1177
    %v1318 = vunpack.c.l.b16 %v1178
    %v1319 = vunpack.c.h.b16 %v1178
    %v1320 = vunpack.c.l.b16 %v1179
    %v1321 = vunpack.c.h.b16 %v1179
    %v1322 = vunpack.c.l.b16 %v1180
    %v1323 = vunpack.c.h.b16 %v1180
    %v1324 = vunpack.c.l.b16 %v1181
    %v1325 = vunpack.c.h.b16 %v1181
    %v1326 = vunpack.c.l.b16 %v1182
    %v1327 = vunpack.c.h.b16 %v1182
    %v1328 = vunpack.c.l.b16 %v1183
    %v1329 = vunpack.c.h.b16 %v1183
    %v1330 = vunpack.c.l.b16 %v1184
    %v1331 = vunpack.c.h.b16 %v1184
    %v1332 = vunpack.c.l.b16 %v1185
    %v1333 = vunpack.c.h.b16 %v1185
    %v1334 = vunpack.c.l.b16 %v1186
    %v1335 = vunpack.c.h.b16 %v1186
    %v1336 = vunpack.c.l.b16 %v1187
    %v1337 = vunpack.c.h.b16 %v1187
    %v1338 = vunpack.c.l.b16 %v1188
    %v1339 = vunpack.c.h.b16 %v1188
    %v1340 = vunpack.c.l.b16 %v1189
    %v1341 = vunpack.c.h.b16 %v1189
    %v1342 = vunpack.c.l.b16 %v1190
    %v1343 = vunpack.c.h.b16 %v1190
    %v1344 = vunpack.c.l.b16 %v1191
    %v1345 = vunpack.c.h.b16 %v1191
    %v1346 = vunpack.c.l.b16 %v1192
    %v1347 = vunpack.c.h.b16 %v1192
    %v1348 = vunpack.c.l.b16 %v1193
    %v1349 = vunpack.c.h.b16 %v1193
    %v1350 = vunpack.c.l.b16 %v1194
    %v1351 = vunpack.c.h.b16 %v1194
    %v1352 = vunpack.c.l.b16 %v1195
    %v1353 = vunpack.c.h.b16 %v1195
    %v1354 = vunpack.c.l.b16 %v1196
    %v1355 = vunpack.c.h.b16 %v1196
    %v1356 = vunpack.c.l.b16 %v1197
    %v1357 = vunpack.c.h.b16 %v1197
    %v1358 = vunpack.c.l.b16 %v1198
    %v1359 = vunpack.c.h.b16 %v1198
    %v1360 = vunpack.c.l.b16 %v1199
    %v1361 = vunpack.c.h.b16 %v1199
    %v1362 = vunpack.c.l.b16 %v1200
    %v1363 = vunpack.c.h.b16 %v1200
    %v1364 = vunpack.c.l.b16 %v1201
    %v1365 = vunpack.c.h.b16 %v1201
    %v1366 = vunpack.c.l.b16 %v1202
    %v1367 = vunpack.c.h.b16 %v1202
    %v1368 = vunpack.c.l.b16 %v1203
    %v1369 = vunpack.c.h.b16 %v1203
    %v1370 = vpack.c.b16 %v1276, %v1274
    %v1371 = vpack.c.b16 %v1277, %v1275
    %v1372 = vpack.c.b16 %v1280, %v1278
    %v1373 = vpack.c.b16 %v1281, %v1279
    %v1374 = vpack.c.b16 %v1284, %v1282
    %v1375 = vpack.c.b16 %v1285, %v1283
    %v1376 = vpack.c.b16 %v1288, %v1286
    %v1377 = vpack.c.b16 %v1289, %v1287
    %v1378 = vpack.c.b16 %v1292, %v1290
    %v1379 = vpack.c.b16 %v1293, %v1291
    %v1380 = vpack.c.b16 %v1296, %v1294
    %v1381 = vpack.c.b16 %v1297, %v1295
    %v1382 = vpack.c.b16 %v1300, %v1298
    %v1383 = vpack.c.b16 %v1301, %v1299
    %v1384 = vpack.c.b16 %v1304, %v1302
    %v1385 = vpack.c.b16 %v1305, %v1303
    %v1386 = vpack.c.b16 %v1308, %v1306
    %v1387 = vpack.c.b16 %v1309, %v1307
    %v1388 = vpack.c.b16 %v1312, %v1310
    %v1389 = vpack.c.b16 %v1313, %v1311
    %v1390 = vpack.c.b16 %v1316, %v1314
    %v1391 = vpack.c.b16 %v1317, %v1315
    %v1392 = vpack.c.b16 %v1320, %v1318
    %v1393 = vpack.c.b16 %v1321, %v1319
    %v1394 = vpack.c.b16 %v1324, %v1322
    %v1395 = vpack.c.b16 %v1325, %v1323
    %v1396 = vpack.c.b16 %v1328, %v1326
    %v1397 = vpack.c.b16 %v1329, %v1327
    %v1398 = vpack.c.b16 %v1332, %v1330
    %v1399 = vpack.c.b16 %v1333, %v1331
    %v1400 = vpack.c.b16 %v1336, %v1334
    %v1401 = vpack.c.b16 %v1337, %v1335
    %v1402 = vpack.c.b16 %v1340, %v1338
    %v1403 = vpack.c.b16 %v1341, %v1339
    %v1404 = vpack.c.b16 %v1344, %v1342
    %v1405 = vpack.c.b16 %v1345, %v1343
    %v1406 = vpack.c.b16 %v1348, %v1346
    %v1407 = vpack.c.b16 %v1349, %v1347
    %v1408 = vpack.c.b16 %v1352, %v1350
    %v1409 = vpack.c.b16 %v1353, %v1351
    %v1410 = vpack.c.b16 %v1356, %v1354
    %v1411 = vpack.c.b16 %v1357, %v1355
    %v1412 = vpack.c.b16 %v1360, %v1358
    %v1413 = vpack.c.b16 %v1361, %v1359
    %v1414 = vpack.c.b16 %v1364, %v1362
    %v1415 = vpack.c.b16 %v1365, %v1363
    %v1416 = vpack.c.b16 %v1368, %v1366
    %v1417 = vpack.c.b16 %v1369, %v1367
    %1466 = vmatpush.bf16.msra.mxu0 %v1384
    %1467 = vmatpush.bf16.msra.mxu0 %v1382
    %1468 = vmatpush.bf16.msra.mxu0 %v1380
    %1469 = vmatpush.bf16.msra.mxu0 %v1378
    %1470 = vmatpush.bf16.msra.mxu0 %v1376
    %1471 = vmatpush.bf16.msra.mxu0 %v1374
    %1472 = vmatpush.bf16.msra.mxu0 %v1372
    %1473 = vmatpush.bf16.msra.mxu0 %v1370
    %1474 = vmatmul.bf16.gmra.mxu0 %v1220
    %v1475 = vpop.f32.mrf.mxu0
    %v1476 = vadd.f32 0.0, %v1475
    %v1477 = vpop.f32.mrf.mxu0
    %1478 = vdwg.mxu0
    %1479 = vmatpush.bf16.msra.mxu0 %v1400
    %1480 = vmatpush.bf16.msra.mxu0 %v1398
    %1481 = vmatpush.bf16.msra.mxu0 %v1396
    %1482 = vmatpush.bf16.msra.mxu0 %v1394
    %1483 = vmatpush.bf16.msra.mxu0 %v1392
    %1484 = vmatpush.bf16.msra.mxu0 %v1390
    %1485 = vmatpush.bf16.msra.mxu0 %v1388
    %1486 = vmatpush.bf16.msra.mxu0 %v1386
    %1487 = vmatmul.bf16.gmra.mxu0 %v1221
    %v1488 = vpop.f32.mrf.mxu0
    %v1489 = vadd.f32 %v1476, %v1488
    %v1490 = vpop.f32.mrf.mxu0
    %1491 = vdwg.mxu0
    %1492 = vmatpush.bf16.msra.mxu0 %v1416
    %1493 = vmatpush.bf16.msra.mxu0 %v1414
    %1494 = vmatpush.bf16.msra.mxu0 %v1412
    %1495 = vmatpush.bf16.msra.mxu0 %v1410
    %1496 = vmatpush.bf16.msra.mxu0 %v1408
    %1497 = vmatpush.bf16.msra.mxu0 %v1406
    %1498 = vmatpush.bf16.msra.mxu0 %v1404
    %1499 = vmatpush.bf16.msra.mxu0 %v1402
    %1500 = vmatmul.bf16.gmra.mxu0 %v1222
    %v1501 = vpop.f32.mrf.mxu0
    %v1502 = vadd.f32 %v1489, %v1501
    %v1503 = vpop.f32.mrf.mxu0
    %1504 = vdwg.mxu0
    %1505 = vmatpush.bf16.msra.mxu0 %v1385
    %1506 = vmatpush.bf16.msra.mxu0 %v1383
    %1507 = vmatpush.bf16.msra.mxu0 %v1381
    %1508 = vmatpush.bf16.msra.mxu0 %v1379
    %1509 = vmatpush.bf16.msra.mxu0 %v1377
    %1510 = vmatpush.bf16.msra.mxu0 %v1375
    %1511 = vmatpush.bf16.msra.mxu0 %v1373
    %1512 = vmatpush.bf16.msra.mxu0 %v1371
    %1513 = vmatmul.bf16.gmra.mxu0 %v1220
    %v1514 = vpop.f32.mrf.mxu0
    %v1515 = vadd.f32 0.0, %v1514
    %v1516 = vpop.f32.mrf.mxu0
    %1517 = vdwg.mxu0
    %1518 = vmatpush.bf16.msra.mxu0 %v1401
    %1519 = vmatpush.bf16.msra.mxu0 %v1399
    %1520 = vmatpush.bf16.msra.mxu0 %v1397
    %1521 = vmatpush.bf16.msra.mxu0 %v1395
    %1522 = vmatpush.bf16.msra.mxu0 %v1393
    %1523 = vmatpush.bf16.msra.mxu0 %v1391
    %1524 = vmatpush.bf16.msra.mxu0 %v1389
    %1525 = vmatpush.bf16.msra.mxu0 %v1387
    %1526 = vmatmul.bf16.gmra.mxu0 %v1221
    %v1527 = vpop.f32.mrf.mxu0
    %v1528 = vadd.f32 %v1515, %v1527
    %v1529 = vpop.f32.mrf.mxu0
    %1530 = vdwg.mxu0
    %1531 = vmatpush.bf16.msra.mxu0 %v1417
    %1532 = vmatpush.bf16.msra.mxu0 %v1415
    %1533 = vmatpush.bf16.msra.mxu0 %v1413
    %1534 = vmatpush.bf16.msra.mxu0 %v1411
    %1535 = vmatpush.bf16.msra.mxu0 %v1409
    %1536 = vmatpush.bf16.msra.mxu0 %v1407
    %1537 = vmatpush.bf16.msra.mxu0 %v1405
    %1538 = vmatpush.bf16.msra.mxu0 %v1403
    %1539 = vmatmul.bf16.gmra.mxu0 %v1222
    %v1540 = vpop.f32.mrf.mxu0
    %v1541 = vadd.f32 %v1528, %v1540
    %v1542 = vpop.f32.mrf.mxu0
    %1543 = vdwg.mxu0
    %v1550 = vunpack.c.l.b16 %v1096
    %v1551 = vunpack.c.l.b16 %v1097
    %v1552 = vunpack.c.l.b16 %v1098
    %v1553 = vunpack.c.l.b16 %v1099
    %v1554 = vunpack.c.l.b16 %v1100
    %v1555 = vunpack.c.l.b16 %v1101
    %v1556 = vsel %vm1216, %v1553, %v1550
    %v1557 = vsel %vm1216, %v1554, %v1551
    %v1558 = vsel %vm1216, %v1555, %v1552
    %v1559 = vpack.c.b16 %v1556, %v1556
    %v1560 = vpack.c.b16 %v1557, %v1557
    %v1561 = vpack.c.b16 %v1558, %v1558
    %v1613 = vunpack.c.l.b16 %v1102
    %v1614 = vunpack.c.h.b16 %v1102
    %v1615 = vunpack.c.l.b16 %v1103
    %v1616 = vunpack.c.h.b16 %v1103
    %v1617 = vunpack.c.l.b16 %v1104
    %v1618 = vunpack.c.h.b16 %v1104
    %v1619 = vunpack.c.l.b16 %v1105
    %v1620 = vunpack.c.h.b16 %v1105
    %v1621 = vunpack.c.l.b16 %v1106
    %v1622 = vunpack.c.h.b16 %v1106
    %v1623 = vunpack.c.l.b16 %v1107
    %v1624 = vunpack.c.h.b16 %v1107
    %v1625 = vunpack.c.l.b16 %v1108
    %v1626 = vunpack.c.h.b16 %v1108
    %v1627 = vunpack.c.l.b16 %v1109
    %v1628 = vunpack.c.h.b16 %v1109
    %v1629 = vunpack.c.l.b16 %v1110
    %v1630 = vunpack.c.h.b16 %v1110
    %v1631 = vunpack.c.l.b16 %v1111
    %v1632 = vunpack.c.h.b16 %v1111
    %v1633 = vunpack.c.l.b16 %v1112
    %v1634 = vunpack.c.h.b16 %v1112
    %v1635 = vunpack.c.l.b16 %v1113
    %v1636 = vunpack.c.h.b16 %v1113
    %v1637 = vunpack.c.l.b16 %v1114
    %v1638 = vunpack.c.h.b16 %v1114
    %v1639 = vunpack.c.l.b16 %v1115
    %v1640 = vunpack.c.h.b16 %v1115
    %v1641 = vunpack.c.l.b16 %v1116
    %v1642 = vunpack.c.h.b16 %v1116
    %v1643 = vunpack.c.l.b16 %v1117
    %v1644 = vunpack.c.h.b16 %v1117
    %v1645 = vunpack.c.l.b16 %v1118
    %v1646 = vunpack.c.h.b16 %v1118
    %v1647 = vunpack.c.l.b16 %v1119
    %v1648 = vunpack.c.h.b16 %v1119
    %v1649 = vunpack.c.l.b16 %v1120
    %v1650 = vunpack.c.h.b16 %v1120
    %v1651 = vunpack.c.l.b16 %v1121
    %v1652 = vunpack.c.h.b16 %v1121
    %v1653 = vunpack.c.l.b16 %v1122
    %v1654 = vunpack.c.h.b16 %v1122
    %v1655 = vunpack.c.l.b16 %v1123
    %v1656 = vunpack.c.h.b16 %v1123
    %v1657 = vunpack.c.l.b16 %v1124
    %v1658 = vunpack.c.h.b16 %v1124
    %v1659 = vunpack.c.l.b16 %v1125
    %v1660 = vunpack.c.h.b16 %v1125
    %v1661 = vunpack.c.l.b16 %v1126
    %v1662 = vunpack.c.h.b16 %v1126
    %v1663 = vunpack.c.l.b16 %v1127
    %v1664 = vunpack.c.h.b16 %v1127
    %v1665 = vunpack.c.l.b16 %v1128
    %v1666 = vunpack.c.h.b16 %v1128
    %v1667 = vunpack.c.l.b16 %v1129
    %v1668 = vunpack.c.h.b16 %v1129
    %v1669 = vunpack.c.l.b16 %v1130
    %v1670 = vunpack.c.h.b16 %v1130
    %v1671 = vunpack.c.l.b16 %v1131
    %v1672 = vunpack.c.h.b16 %v1131
    %v1673 = vunpack.c.l.b16 %v1132
    %v1674 = vunpack.c.h.b16 %v1132
    %v1675 = vunpack.c.l.b16 %v1133
    %v1676 = vunpack.c.h.b16 %v1133
    %v1677 = vunpack.c.l.b16 %v1134
    %v1678 = vunpack.c.h.b16 %v1134
    %v1679 = vunpack.c.l.b16 %v1135
    %v1680 = vunpack.c.h.b16 %v1135
    %v1681 = vunpack.c.l.b16 %v1136
    %v1682 = vunpack.c.h.b16 %v1136
    %v1683 = vunpack.c.l.b16 %v1137
    %v1684 = vunpack.c.h.b16 %v1137
    %v1685 = vunpack.c.l.b16 %v1138
    %v1686 = vunpack.c.h.b16 %v1138
    %v1687 = vunpack.c.l.b16 %v1139
    %v1688 = vunpack.c.h.b16 %v1139
    %v1689 = vunpack.c.l.b16 %v1140
    %v1690 = vunpack.c.h.b16 %v1140
    %v1691 = vunpack.c.l.b16 %v1141
    %v1692 = vunpack.c.h.b16 %v1141
    %v1693 = vunpack.c.l.b16 %v1142
    %v1694 = vunpack.c.h.b16 %v1142
    %v1695 = vunpack.c.l.b16 %v1143
    %v1696 = vunpack.c.h.b16 %v1143
    %v1697 = vunpack.c.l.b16 %v1144
    %v1698 = vunpack.c.h.b16 %v1144
    %v1699 = vunpack.c.l.b16 %v1145
    %v1700 = vunpack.c.h.b16 %v1145
    %v1701 = vunpack.c.l.b16 %v1146
    %v1702 = vunpack.c.h.b16 %v1146
    %v1703 = vunpack.c.l.b16 %v1147
    %v1704 = vunpack.c.h.b16 %v1147
    %v1705 = vunpack.c.l.b16 %v1148
    %v1706 = vunpack.c.h.b16 %v1148
    %v1707 = vunpack.c.l.b16 %v1149
    %v1708 = vunpack.c.h.b16 %v1149
    %v1709 = vpack.c.b16 %v1615, %v1613
    %v1710 = vpack.c.b16 %v1616, %v1614
    %v1711 = vpack.c.b16 %v1619, %v1617
    %v1712 = vpack.c.b16 %v1620, %v1618
    %v1713 = vpack.c.b16 %v1623, %v1621
    %v1714 = vpack.c.b16 %v1624, %v1622
    %v1715 = vpack.c.b16 %v1627, %v1625
    %v1716 = vpack.c.b16 %v1628, %v1626
    %v1717 = vpack.c.b16 %v1631, %v1629
    %v1718 = vpack.c.b16 %v1632, %v1630
    %v1719 = vpack.c.b16 %v1635, %v1633
    %v1720 = vpack.c.b16 %v1636, %v1634
    %v1721 = vpack.c.b16 %v1639, %v1637
    %v1722 = vpack.c.b16 %v1640, %v1638
    %v1723 = vpack.c.b16 %v1643, %v1641
    %v1724 = vpack.c.b16 %v1644, %v1642
    %v1725 = vpack.c.b16 %v1647, %v1645
    %v1726 = vpack.c.b16 %v1648, %v1646
    %v1727 = vpack.c.b16 %v1651, %v1649
    %v1728 = vpack.c.b16 %v1652, %v1650
    %v1729 = vpack.c.b16 %v1655, %v1653
    %v1730 = vpack.c.b16 %v1656, %v1654
    %v1731 = vpack.c.b16 %v1659, %v1657
    %v1732 = vpack.c.b16 %v1660, %v1658
    %v1733 = vpack.c.b16 %v1663, %v1661
    %v1734 = vpack.c.b16 %v1664, %v1662
    %v1735 = vpack.c.b16 %v1667, %v1665
    %v1736 = vpack.c.b16 %v1668, %v1666
    %v1737 = vpack.c.b16 %v1671, %v1669
    %v1738 = vpack.c.b16 %v1672, %v1670
    %v1739 = vpack.c.b16 %v1675, %v1673
    %v1740 = vpack.c.b16 %v1676, %v1674
    %v1741 = vpack.c.b16 %v1679, %v1677
    %v1742 = vpack.c.b16 %v1680, %v1678
    %v1743 = vpack.c.b16 %v1683, %v1681
    %v1744 = vpack.c.b16 %v1684, %v1682
    %v1745 = vpack.c.b16 %v1687, %v1685
    %v1746 = vpack.c.b16 %v1688, %v1686
    %v1747 = vpack.c.b16 %v1691, %v1689
    %v1748 = vpack.c.b16 %v1692, %v1690
    %v1749 = vpack.c.b16 %v1695, %v1693
    %v1750 = vpack.c.b16 %v1696, %v1694
    %v1751 = vpack.c.b16 %v1699, %v1697
    %v1752 = vpack.c.b16 %v1700, %v1698
    %v1753 = vpack.c.b16 %v1703, %v1701
    %v1754 = vpack.c.b16 %v1704, %v1702
    %v1755 = vpack.c.b16 %v1707, %v1705
    %v1756 = vpack.c.b16 %v1708, %v1706
    %1805 = vmatpush.bf16.msra.mxu0 %v1723
    %1806 = vmatpush.bf16.msra.mxu0 %v1721
    %1807 = vmatpush.bf16.msra.mxu0 %v1719
    %1808 = vmatpush.bf16.msra.mxu0 %v1717
    %1809 = vmatpush.bf16.msra.mxu0 %v1715
    %1810 = vmatpush.bf16.msra.mxu0 %v1713
    %1811 = vmatpush.bf16.msra.mxu0 %v1711
    %1812 = vmatpush.bf16.msra.mxu0 %v1709
    %1813 = vmatmul.bf16.gmra.mxu0 %v1559
    %v1814 = vpop.f32.mrf.mxu0
    %v1815 = vadd.f32 %v1502, %v1814
    %v1816 = vpop.f32.mrf.mxu0
    %1817 = vdwg.mxu0
    %1818 = vmatpush.bf16.msra.mxu0 %v1739
    %1819 = vmatpush.bf16.msra.mxu0 %v1737
    %1820 = vmatpush.bf16.msra.mxu0 %v1735
    %1821 = vmatpush.bf16.msra.mxu0 %v1733
    %1822 = vmatpush.bf16.msra.mxu0 %v1731
    %1823 = vmatpush.bf16.msra.mxu0 %v1729
    %1824 = vmatpush.bf16.msra.mxu0 %v1727
    %1825 = vmatpush.bf16.msra.mxu0 %v1725
    %1826 = vmatmul.bf16.gmra.mxu0 %v1560
    %v1827 = vpop.f32.mrf.mxu0
    %v1828 = vadd.f32 %v1815, %v1827
    %v1829 = vpop.f32.mrf.mxu0
    %1830 = vdwg.mxu0
    %1831 = vmatpush.bf16.msra.mxu0 %v1755
    %1832 = vmatpush.bf16.msra.mxu0 %v1753
    %1833 = vmatpush.bf16.msra.mxu0 %v1751
    %1834 = vmatpush.bf16.msra.mxu0 %v1749
    %1835 = vmatpush.bf16.msra.mxu0 %v1747
    %1836 = vmatpush.bf16.msra.mxu0 %v1745
    %1837 = vmatpush.bf16.msra.mxu0 %v1743
    %1838 = vmatpush.bf16.msra.mxu0 %v1741
    %1839 = vmatmul.bf16.gmra.mxu0 %v1561
    %v1840 = vpop.f32.mrf.mxu0
    %v1841 = vadd.f32 %v1828, %v1840
    %v1842 = vpop.f32.mrf.mxu0
    %1843 = vdwg.mxu0
    %1844 = vmatpush.bf16.msra.mxu0 %v1724
    %1845 = vmatpush.bf16.msra.mxu0 %v1722
    %1846 = vmatpush.bf16.msra.mxu0 %v1720
    %1847 = vmatpush.bf16.msra.mxu0 %v1718
    %1848 = vmatpush.bf16.msra.mxu0 %v1716
    %1849 = vmatpush.bf16.msra.mxu0 %v1714
    %1850 = vmatpush.bf16.msra.mxu0 %v1712
    %1851 = vmatpush.bf16.msra.mxu0 %v1710
    %1852 = vmatmul.bf16.gmra.mxu0 %v1559
    %v1853 = vpop.f32.mrf.mxu0
    %v1854 = vadd.f32 %v1541, %v1853
    %v1855 = vpop.f32.mrf.mxu0
    %1856 = vdwg.mxu0
    %1857 = vmatpush.bf16.msra.mxu0 %v1740
    %1858 = vmatpush.bf16.msra.mxu0 %v1738
    %1859 = vmatpush.bf16.msra.mxu0 %v1736
    %1860 = vmatpush.bf16.msra.mxu0 %v1734
    %1861 = vmatpush.bf16.msra.mxu0 %v1732
    %1862 = vmatpush.bf16.msra.mxu0 %v1730
    %1863 = vmatpush.bf16.msra.mxu0 %v1728
    %1864 = vmatpush.bf16.msra.mxu0 %v1726
    %1865 = vmatmul.bf16.gmra.mxu0 %v1560
    %v1866 = vpop.f32.mrf.mxu0
    %v1867 = vadd.f32 %v1854, %v1866
    %v1868 = vpop.f32.mrf.mxu0
    %1869 = vdwg.mxu0
    %1870 = vmatpush.bf16.msra.mxu0 %v1756
    %1871 = vmatpush.bf16.msra.mxu0 %v1754
    %1872 = vmatpush.bf16.msra.mxu0 %v1752
    %1873 = vmatpush.bf16.msra.mxu0 %v1750
    %1874 = vmatpush.bf16.msra.mxu0 %v1748
    %1875 = vmatpush.bf16.msra.mxu0 %v1746
    %1876 = vmatpush.bf16.msra.mxu0 %v1744
    %1877 = vmatpush.bf16.msra.mxu0 %v1742
    %1878 = vmatmul.bf16.gmra.mxu0 %v1561
    %v1879 = vpop.f32.mrf.mxu0
    %v1880 = vadd.f32 %v1867, %v1879
    %v1881 = vpop.f32.mrf.mxu0
    %1882 = vdwg.mxu0
    %v1883 = vld [vmem:[%s5] sm:$0x3]
    %v1885 = vperm.slane %v1883, 0
    %v1886 = vperm.slane %v1883, 1
    %v1889 = vadd.f32 %v1841, %v1885
    %v1890 = vadd.f32 %v1880, %v1886
    %v1891 = vmax.f32 %v1889, 0.0
    %v1892 = vmax.f32 %v1890, 0.0
    %v1893 = vld [vmem:[%s6] sm:$0xff]
    %v1894 = vld [vmem:[%s6 + $0x8] sm:$0xff]
    %v1895 = vld [vmem:[%s6 + $0x10] sm:$0xff]
    %v1896 = vld [vmem:[%s6 + $0x18] sm:$0xff]
    %v1897 = vld [vmem:[%s6 + $0x20] sm:$0xff]
    %v1898 = vld [vmem:[%s6 + $0x28] sm:$0xff]
    %v1899 = vld [vmem:[%s6 + $0x30] sm:$0xff]
    %v1900 = vld [vmem:[%s6 + $0x38] sm:$0xff]
    %v1901 = vld [vmem:[%s6 + $0x40] sm:$0xff]
    %v1902 = vld [vmem:[%s6 + $0x48] sm:$0xff]
    %v1903 = vld [vmem:[%s6 + $0x50] sm:$0xff]
    %v1904 = vld [vmem:[%s6 + $0x58] sm:$0xff]
    %v1905 = vld [vmem:[%s6 + $0x60] sm:$0xff]
    %v1906 = vld [vmem:[%s6 + $0x68] sm:$0xff]
    %v1907 = vld [vmem:[%s6 + $0x70] sm:$0xff]
    %v1908 = vld [vmem:[%s6 + $0x78] sm:$0xff]
    %v1909 = vld [vmem:[%s6 + $0x80] sm:$0xff]
    %v1910 = vld [vmem:[%s6 + $0x88] sm:$0xff]
    %v1911 = vld [vmem:[%s6 + $0x90] sm:$0xff]
    %v1912 = vld [vmem:[%s6 + $0x98] sm:$0xff]
    %v1913 = vld [vmem:[%s6 + $0xa0] sm:$0xff]
    %v1914 = vld [vmem:[%s6 + $0xa8] sm:$0xff]
    %v1915 = vld [vmem:[%s6 + $0xb0] sm:$0xff]
    %v1916 = vld [vmem:[%s6 + $0xb8] sm:$0xff]
    %v1917 = vld [vmem:[%s6 + $0xc0] sm:$0xff]
    %v1918 = vld [vmem:[%s6 + $0xc8] sm:$0xff]
    %v1919 = vld [vmem:[%s6 + $0xd0] sm:$0xff]
    %v1920 = vld [vmem:[%s6 + $0xd8] sm:$0xff]
    %v1921 = vld [vmem:[%s6 + $0xe0] sm:$0xff]
    %v1922 = vld [vmem:[%s6 + $0xe8] sm:$0xff]
    %v1923 = vld [vmem:[%s6 + $0xf0] sm:$0xff]
    %v1924 = vld [vmem:[%s6 + $0xf8] sm:$0xff]
    %v1925 = vld [vmem:[%s7] sm:$0x1]
    %v1927 = vperm.slane %v1925, 0
    %1929 = vmatpush.msra.mxu0 %v1908
    %1930 = vmatpush.msra.mxu0 %v1907
    %1931 = vmatpush.msra.mxu0 %v1906
    %1932 = vmatpush.msra.mxu0 %v1905
    %1933 = vmatpush.msra.mxu0 %v1904
    %1934 = vmatpush.msra.mxu0 %v1903
    %1935 = vmatpush.msra.mxu0 %v1902
    %1936 = vmatpush.msra.mxu0 %v1901
    %1937 = vmatpush.msra.mxu0 %v1900
    %1938 = vmatpush.msra.mxu0 %v1899
    %1939 = vmatpush.msra.mxu0 %v1898
    %1940 = vmatpush.msra.mxu0 %v1897
    %1941 = vmatpush.msra.mxu0 %v1896
    %1942 = vmatpush.msra.mxu0 %v1895
    %1943 = vmatpush.msra.mxu0 %v1894
    %1944 = vmatpush.msra.mxu0 %v1893
    %1945 = vmatmul.f32.gmra.mxu0 %v1891
    %v1946 = vpop.f32.mrf.mxu0
    %v1947 = vadd.f32 %v1927, %v1946
    %1948 = vdwg.mxu0
    %1949 = vmatpush.msra.mxu0 %v1924
    %1950 = vmatpush.msra.mxu0 %v1923
    %1951 = vmatpush.msra.mxu0 %v1922
    %1952 = vmatpush.msra.mxu0 %v1921
    %1953 = vmatpush.msra.mxu0 %v1920
    %1954 = vmatpush.msra.mxu0 %v1919
    %1955 = vmatpush.msra.mxu0 %v1918
    %1956 = vmatpush.msra.mxu0 %v1917
    %1957 = vmatpush.msra.mxu0 %v1916
    %1958 = vmatpush.msra.mxu0 %v1915
    %1959 = vmatpush.msra.mxu0 %v1914
    %1960 = vmatpush.msra.mxu0 %v1913
    %1961 = vmatpush.msra.mxu0 %v1912
    %1962 = vmatpush.msra.mxu0 %v1911
    %1963 = vmatpush.msra.mxu0 %v1910
    %1964 = vmatpush.msra.mxu0 %v1909
    %1965 = vmatmul.f32.gmra.mxu0 %v1892
    %v1966 = vpop.f32.mrf.mxu0
    %v1967 = vadd.f32 %v1947, %v1966
    %1968 = vdwg.mxu0
    %vm1969 = vcmask 74752
    %v1970 = vsel %vm1969, %v1967, -inf
    %1971 = vmax.xlane.f32.xlu0 %v1970
    %v1972 = vpop.xlane.xlu0 %1971
    %v1973 = vsub.f32 %v1967, %v1972
    %v1974 = vmul.f32 %v1973, 1.442695
    %v1975 = vpow.pop %v1974
    %v1976 = vsel %vm1969, %v1975, 0.0
    %1977 = vadd.xlane.f32.xlu0 %v1976
    %v1978 = vpop.xlane.xlu0 %1977
    %v1979 = vlog2.pop %v1978
    %v1980 = vmul.f32 %v1979, 0.6931472
    %v1981 = vsub.f32 %v1973, %v1980
    %1982 = vst.msk [vmem:[#allocation7] sm:$0x3] %vm1969, %v1981
    // Predicated region
    $region42: #{cnn_cdist_forward.1} parent=1 // pred_check
      _
    $region43: #{cnn_cdist_forward.1} parent=1 // pred_check_branch
      %1984 = sbr.rel (0) target = $region45
    $region44: #{cnn_cdist_forward.1} parent=1 // pred_region
      %1986 = vsyncadd [#allocation4], 0
      %s1988 = sshll.u32 [#allocation7], 4
      %s1989 = int_to_ptr.vmem [resolvable:$true] %s1988
      %s1990 = sshll.u32 %s8, 4
      %s1991 = int_to_ptr.hbm [resolvable:$true] %s1990
      %1993 = dma.vmem_to_hbm [thread:$0]  %s1989, 32, %s1991, [#allocation4]
    $region45: #{cnn_cdist_forward.1} parent=1 // pred_fallthru
      _
    // Predicated region
    $region46: #{cnn_cdist_forward.1} parent=1 // pred_check
      _
    $region47: #{cnn_cdist_forward.1} parent=1 // pred_check_branch
      %1995 = sbr.rel (0) target = $region49
    $region48: #{cnn_cdist_forward.1} parent=1 // pred_region
      %1997 = dma.done [#allocation4], 32
    $region49: #{cnn_cdist_forward.1} parent=1 // pred_fallthru
      _
    %1998 = vsyncpa [#allocation3], 1
    %1999 = vsyncpa [#allocation6], 1
    %2000 = vsyncpa [#allocation4], 1

</llo_original>
